<compile_context>
chip_gen: v5e
topology: v5e:2x2
jax: 0.10.0
libtpu: 0.0.40
codegen_flags: <defaults>
</compile_context>

<pallas_src>
import functools

import numpy as np
import jax
import jax.numpy as jnp
from jax.experimental import pallas as pl
from jax.experimental.pallas import tpu as pltpu


# ----------------------------------------------------------------------------
# The single fused Pallas kernel
# ----------------------------------------------------------------------------
def _decoder_kernel(z_ref, fcw_ref, fcb_ref, e_ref,
                    t1_ref, s1_ref, b1_ref,
                    t2_ref, s2_ref, b2_ref,
                    t3_ref, s3_ref, b3_ref,
                    o_ref, *, s4, cin):
    f32 = jnp.float32

    # ---- fc + ReLU (fc weight columns pre-permuted to (h, w, c) order) ----
    t0 = jnp.dot(z_ref[...], fcw_ref[...], preferred_element_type=f32)
    t0 = jnp.maximum(t0 + fcb_ref[...], 0.0)            # (B, s4*s4*cin)

    # ---- unpack to conv layout (B*s4, s4*cin): row b*s4+h <- t0[b, h-block] ----
    row = s4 * cin
    x = None
    for h in range(s4):
        piece = jnp.dot(e_ref[h], t0[:, h * row:(h + 1) * row],
                        preferred_element_type=f32)
        x = piece if x is None else x + piece            # (B*s4, s4*cin)

    def conv_transpose(x, t_ref, s_ref, b_ref, act):
        # Out = sum_kh S[kh] @ (X @ T[kh]) + bias   (T/S built in the wrapper)
        acc = None
        for kh in range(t_ref.shape[0]):
            y = jnp.dot(x, t_ref[kh], preferred_element_type=f32)
            contrib = jnp.dot(s_ref[kh], y, preferred_element_type=f32)
            acc = contrib if acc is None else acc + contrib
        acc = acc + b_ref[...]
        if act == "relu":
            return jnp.maximum(acc, 0.0)
        return jax.nn.sigmoid(acc)

    x = conv_transpose(x, t1_ref, s1_ref, b1_ref, "relu")     # (B*5,  5*32)
    x = conv_transpose(x, t2_ref, s2_ref, b2_ref, "relu")     # (B*8,  8*32)
    x = conv_transpose(x, t3_ref, s3_ref, b3_ref, "sigmoid")  # (B*16, 16*3)
    o_ref[...] = x.astype(o_ref.dtype)


# ----------------------------------------------------------------------------
# Wrapper-side weight restructuring (pure layout plumbing, tiny tensors)
# ----------------------------------------------------------------------------
def _fc_prep(fc_w_t, fc_b, s4, filt, batch):
    """Permute fc output columns from PyTorch (c, h, w) order to (h, w, c),
    and build one-hot row-placement matrices used to unpack it per h-row."""
    perm = np.empty(s4 * s4 * filt, np.int32)
    for h in range(s4):
        for w in range(s4):
            for c in range(filt):
                perm[h * s4 * filt + w * filt + c] = c * s4 * s4 + h * s4 + w
    e = np.zeros((s4, batch * s4, batch), np.float32)
    for h in range(s4):
        for n in range(batch):
            e[h, n * s4 + h, n] = 1.0
    return fc_w_t[:, perm], fc_b[perm][None, :], jnp.asarray(e)


def _band_matrices(w, stride, pad, win, wout):
    """PyTorch ConvTranspose2d weight (Cin, Cout, kH, kW) -> banded matrices
    T of shape (kH, Win*Cin, Wout*Cout) that fold kernel-width, W-stride and
    W-padding:  T[kh][(iw, ci), (ow, co)] = w[ci, co, kh, ow + pad - iw*stride]
    when that kw index is valid, else 0."""
    cin, cout, kh_, kw_ = w.shape
    sel = np.zeros((win, wout, kw_), np.float32)
    for iw in range(win):
        for ow in range(wout):
            kw = ow + pad - iw * stride
            if 0 <= kw < kw_:
                sel[iw, ow, kw] = 1.0
    t = jnp.einsum("iok,cdhk->hicod", jnp.asarray(sel), w.astype(jnp.float32))
    return t.reshape(kh_, win * cin, wout * cout)


def _row_scatter(stride, pad, k, hin, hout, batch):
    """0/1 constants S of shape (kH, B*Hout, B*Hin):
       S[kh][(b, oh), (b, ih)] = 1  iff  oh == ih*stride - pad + kh."""
    s = np.zeros((k, batch * hout, batch * hin), np.float32)
    for kh in range(k):
        for ih in range(hin):
            oh = ih * stride - pad + kh
            if 0 <= oh < hout:
                for b in range(batch):
                    s[kh, b * hout + oh, b * hin + ih] = 1.0
    return jnp.asarray(s)


def decoder_forward(z, params, *, x_dim, filt):
    B = z.shape[0]
    s4 = int(np.sqrt(x_dim) / 4)
    k = params["w1"].shape[2]                  # 4
    c_dim = params["w3"].shape[1]

    conv_cfg = [
        (params["w1"], params["b1"], 1, 1),
        (params["w2"], params["b2"], 2, 2),
        (params["w3"], params["b3"], 2, 1),
    ]
    # ConvTranspose2d: out = (in - 1)*stride - 2*pad + k  -> [4, 5, 8, 16]
    sizes = [s4]
    for _, _, s, p in conv_cfg:
        sizes.append((sizes[-1] - 1) * s - 2 * p + k)

    fcw, fcb, e = _fc_prep(params["fc_w_t"], params["fc_b"], s4, filt, B)

    ops = []
    for li, (w, b, s, p) in enumerate(conv_cfg):
        hin, hout = sizes[li], sizes[li + 1]
        ops.append(_band_matrices(w, s, p, hin, hout))
        ops.append(_row_scatter(s, p, k, hin, hout, B))
        ops.append(jnp.tile(b, hout)[None, :])

    h_out = sizes[-1]
    kern = functools.partial(_decoder_kernel, s4=s4, cin=filt)
    n_in = 4 + len(ops)
    flat = pl.pallas_call(
        kern,
        out_shape=jax.ShapeDtypeStruct((B * h_out, h_out * c_dim), jnp.float32),
        in_specs=[pl.BlockSpec(memory_space=pltpu.MemorySpace.VMEM)
                  for _ in range(n_in)],
        out_specs=pl.BlockSpec(memory_space=pltpu.MemorySpace.VMEM),
    )(z, fcw, fcb, e, *ops)

    # (B*H, W*C) NHWC slab -> NCHW (B, c_dim, H, W), matching PyTorch.
    return jnp.transpose(flat.reshape(B, h_out, h_out, c_dim), (0, 3, 1, 2))


# ----------------------------------------------------------------------------
# Independent numpy reference (direct PyTorch ConvTranspose2d semantics)
# ----------------------------------------------------------------------------
def _ref_convT(x, w, b, stride, pad):
    N, Cin, H, W = x.shape
    _, Cout, kH, kW = w.shape
    Hout = (H - 1) * stride - 2 * pad + kH
    Wout = (W - 1) * stride - 2 * pad + kW
    y = np.zeros((N, Cout, Hout, Wout), np.float32)
    for ih in range(H):
        for kh in range(kH):
            oh = ih * stride - pad + kh
            if not (0 <= oh < Hout):
                continue
            for iw in range(W):
                for kw in range(kW):
                    ow = iw * stride - pad + kw
                    if not (0 <= ow < Wout):
                        continue
                    y[:, :, oh, ow] += x[:, :, ih, iw] @ w[:, :, kh, kw]
    return y + b[None, :, None, None]


def ref_forward(z, p, x_dim, filt):
    t = np.maximum(z @ p["fc_w_t"] + p["fc_b"], 0.0)
    B = z.shape[0]
    s4 = int(np.sqrt(x_dim) / 4)
    t = t.reshape(B, filt, s4, s4)
    h = np.maximum(_ref_convT(t, p["w1"], p["b1"], 1, 1), 0.0)
    h = np.maximum(_ref_convT(h, p["w2"], p["b2"], 2, 2), 0.0)
    h = _ref_convT(h, p["w3"], p["b3"], 2, 1)
    return 1.0 / (1.0 + np.exp(-h))


# ----------------------------------------------------------------------------
if __name__ == "__main__":
    B, Z_DIM, C_DIM, X_DIM, FILT = 2, 8, 3, 256, 32   # x_dim = 16*16
    fc_out = FILT * X_DIM // 16

    key = jax.random.PRNGKey(0)
    keys = jax.random.split(key, 9)
    params = {
        "fc_w_t": 0.05 * jax.random.normal(keys[0], (Z_DIM, fc_out), jnp.float32),
        "fc_b":   0.05 * jax.random.normal(keys[1], (fc_out,), jnp.float32),
        "w1":     0.05 * jax.random.normal(keys[2], (FILT, FILT, 4, 4), jnp.float32),
        "b1":     0.05 * jax.random.normal(keys[3], (FILT,), jnp.float32),
        "w2":     0.05 * jax.random.normal(keys[4], (FILT, FILT, 4, 4), jnp.float32),
        "b2":     0.05 * jax.random.normal(keys[5], (FILT,), jnp.float32),
        "w3":     0.05 * jax.random.normal(keys[6], (FILT, C_DIM, 4, 4), jnp.float32),
        "b3":     0.05 * jax.random.normal(keys[7], (C_DIM,), jnp.float32),
    }
    z = jax.random.normal(keys[8], (B, Z_DIM), jnp.float32)

    fwd = jax.jit(functools.partial(decoder_forward, x_dim=X_DIM, filt=FILT))
    out = jax.block_until_ready(fwd(z, params))

    ref = ref_forward(np.asarray(z),
                      {k: np.asarray(v) for k, v in params.items()},
                      X_DIM, FILT)
    assert out.shape == (B, C_DIM, 16, 16), out.shape
    np.testing.assert_allclose(np.asarray(out), ref, rtol=1e-3, atol=1e-3)
    print("KERNEL_OK")
</pallas_src>

<mosaic_0001>
module attributes {stable_mosaic.version = 11 : i64} {
  func.func @_decoder_kernel(%arg0: memref<2x8xf32, #tpu.memory_space<vmem>>, %arg1: memref<8x512xf32, #tpu.memory_space<vmem>>, %arg2: memref<1x512xf32, #tpu.memory_space<vmem>>, %arg3: memref<4x8x2xf32, #tpu.memory_space<vmem>>, %arg4: memref<4x128x160xf32, #tpu.memory_space<vmem>>, %arg5: memref<4x10x8xf32, #tpu.memory_space<vmem>>, %arg6: memref<1x160xf32, #tpu.memory_space<vmem>>, %arg7: memref<4x160x256xf32, #tpu.memory_space<vmem>>, %arg8: memref<4x16x10xf32, #tpu.memory_space<vmem>>, %arg9: memref<1x256xf32, #tpu.memory_space<vmem>>, %arg10: memref<4x256x48xf32, #tpu.memory_space<vmem>>, %arg11: memref<4x32x16xf32, #tpu.memory_space<vmem>>, %arg12: memref<1x48xf32, #tpu.memory_space<vmem>>, %arg13: memref<32x48xf32, #tpu.memory_space<vmem>>) attributes {dimension_semantics = [], scalar_prefetch = 0 : i64, scratch_operands = 0 : i64, tpu.core_type = #tpu.core_type<tc>} {
    %c0 = arith.constant 0 : index
    %c0_0 = arith.constant 0 : index
    %0 = vector.load %arg0[%c0, %c0_0] : memref<2x8xf32, #tpu.memory_space<vmem>>, vector<2x8xf32>
    %c0_1 = arith.constant 0 : index
    %c0_2 = arith.constant 0 : index
    %1 = vector.load %arg1[%c0_1, %c0_2] : memref<8x512xf32, #tpu.memory_space<vmem>>, vector<8x512xf32>
    %cst = arith.constant dense<0.000000e+00> : vector<2x512xf32>
    %2 = tpu.matmul %0, %1, %cst {dimension_numbers = #tpu.dot_dimension_numbers<[1], [0], [0], [1], [0, 0, 1, 1], [], []>} : vector<2x8xf32>, vector<8x512xf32>, vector<2x512xf32> -> vector<2x512xf32>
    %c0_3 = arith.constant 0 : index
    %c0_4 = arith.constant 0 : index
    %3 = vector.load %arg2[%c0_3, %c0_4] : memref<1x512xf32, #tpu.memory_space<vmem>>, vector<1x512xf32>
    %4 = vector.broadcast %3 : vector<1x512xf32> to vector<2x512xf32>
    %5 = arith.addf %2, %4 : vector<2x512xf32>
    %cst_5 = arith.constant 0.000000e+00 : f32
    %6 = vector.broadcast %cst_5 : f32 to vector<2x512xf32>
    %7 = arith.maximumf %5, %6 : vector<2x512xf32>
    %c0_6 = arith.constant 0 : index
    %c0_7 = arith.constant 0 : index
    %c0_8 = arith.constant 0 : index
    %8 = vector.load %arg3[%c0_6, %c0_7, %c0_8] : memref<4x8x2xf32, #tpu.memory_space<vmem>>, vector<1x8x2xf32>
    %9 = vector.shape_cast %8 : vector<1x8x2xf32> to vector<8x2xf32>
    %10 = vector.extract_strided_slice %7 {offsets = [0, 0], sizes = [2, 128], strides = [1, 1]} : vector<2x512xf32> to vector<2x128xf32>
    %cst_9 = arith.constant dense<0.000000e+00> : vector<8x128xf32>
    %11 = tpu.matmul %9, %10, %cst_9 {dimension_numbers = #tpu.dot_dimension_numbers<[1], [0], [0], [1], [0, 0, 1, 1], [], []>} : vector<8x2xf32>, vector<2x128xf32>, vector<8x128xf32> -> vector<8x128xf32>
    %c1 = arith.constant 1 : index
    %c0_10 = arith.constant 0 : index
    %c0_11 = arith.constant 0 : index
    %12 = vector.load %arg3[%c1, %c0_10, %c0_11] : memref<4x8x2xf32, #tpu.memory_space<vmem>>, vector<1x8x2xf32>
    %13 = vector.shape_cast %12 : vector<1x8x2xf32> to vector<8x2xf32>
    %14 = vector.extract_strided_slice %7 {offsets = [0, 128], sizes = [2, 128], strides = [1, 1]} : vector<2x512xf32> to vector<2x128xf32>
    %cst_12 = arith.constant dense<0.000000e+00> : vector<8x128xf32>
    %15 = tpu.matmul %13, %14, %cst_12 {dimension_numbers = #tpu.dot_dimension_numbers<[1], [0], [0], [1], [0, 0, 1, 1], [], []>} : vector<8x2xf32>, vector<2x128xf32>, vector<8x128xf32> -> vector<8x128xf32>
    %16 = arith.addf %11, %15 : vector<8x128xf32>
    %c2 = arith.constant 2 : index
    %c0_13 = arith.constant 0 : index
    %c0_14 = arith.constant 0 : index
    %17 = vector.load %arg3[%c2, %c0_13, %c0_14] : memref<4x8x2xf32, #tpu.memory_space<vmem>>, vector<1x8x2xf32>
    %18 = vector.shape_cast %17 : vector<1x8x2xf32> to vector<8x2xf32>
    %19 = vector.extract_strided_slice %7 {offsets = [0, 256], sizes = [2, 128], strides = [1, 1]} : vector<2x512xf32> to vector<2x128xf32>
    %cst_15 = arith.constant dense<0.000000e+00> : vector<8x128xf32>
    %20 = tpu.matmul %18, %19, %cst_15 {dimension_numbers = #tpu.dot_dimension_numbers<[1], [0], [0], [1], [0, 0, 1, 1], [], []>} : vector<8x2xf32>, vector<2x128xf32>, vector<8x128xf32> -> vector<8x128xf32>
    %21 = arith.addf %16, %20 : vector<8x128xf32>
    %c3 = arith.constant 3 : index
    %c0_16 = arith.constant 0 : index
    %c0_17 = arith.constant 0 : index
    %22 = vector.load %arg3[%c3, %c0_16, %c0_17] : memref<4x8x2xf32, #tpu.memory_space<vmem>>, vector<1x8x2xf32>
    %23 = vector.shape_cast %22 : vector<1x8x2xf32> to vector<8x2xf32>
    %24 = vector.extract_strided_slice %7 {offsets = [0, 384], sizes = [2, 128], strides = [1, 1]} : vector<2x512xf32> to vector<2x128xf32>
    %cst_18 = arith.constant dense<0.000000e+00> : vector<8x128xf32>
    %25 = tpu.matmul %23, %24, %cst_18 {dimension_numbers = #tpu.dot_dimension_numbers<[1], [0], [0], [1], [0, 0, 1, 1], [], []>} : vector<8x2xf32>, vector<2x128xf32>, vector<8x128xf32> -> vector<8x128xf32>
    %26 = arith.addf %21, %25 : vector<8x128xf32>
    %c0_19 = arith.constant 0 : index
    %c0_20 = arith.constant 0 : index
    %c0_21 = arith.constant 0 : index
    %27 = vector.load %arg4[%c0_19, %c0_20, %c0_21] : memref<4x128x160xf32, #tpu.memory_space<vmem>>, vector<1x128x160xf32>
    %28 = vector.shape_cast %27 : vector<1x128x160xf32> to vector<128x160xf32>
    %cst_22 = arith.constant dense<0.000000e+00> : vector<8x160xf32>
    %29 = tpu.matmul %26, %28, %cst_22 {dimension_numbers = #tpu.dot_dimension_numbers<[1], [0], [0], [1], [0, 0, 1, 1], [], []>} : vector<8x128xf32>, vector<128x160xf32>, vector<8x160xf32> -> vector<8x160xf32>
    %c0_23 = arith.constant 0 : index
    %c0_24 = arith.constant 0 : index
    %c0_25 = arith.constant 0 : index
    %30 = vector.load %arg5[%c0_23, %c0_24, %c0_25] : memref<4x10x8xf32, #tpu.memory_space<vmem>>, vector<1x10x8xf32>
    %31 = vector.shape_cast %30 : vector<1x10x8xf32> to vector<10x8xf32>
    %cst_26 = arith.constant dense<0.000000e+00> : vector<10x160xf32>
    %32 = tpu.matmul %31, %29, %cst_26 {dimension_numbers = #tpu.dot_dimension_numbers<[1], [0], [0], [1], [0, 0, 1, 1], [], []>} : vector<10x8xf32>, vector<8x160xf32>, vector<10x160xf32> -> vector<10x160xf32>
    %c1_27 = arith.constant 1 : index
    %c0_28 = arith.constant 0 : index
    %c0_29 = arith.constant 0 : index
    %33 = vector.load %arg4[%c1_27, %c0_28, %c0_29] : memref<4x128x160xf32, #tpu.memory_space<vmem>>, vector<1x128x160xf32>
    %34 = vector.shape_cast %33 : vector<1x128x160xf32> to vector<128x160xf32>
    %cst_30 = arith.constant dense<0.000000e+00> : vector<8x160xf32>
    %35 = tpu.matmul %26, %34, %cst_30 {dimension_numbers = #tpu.dot_dimension_numbers<[1], [0], [0], [1], [0, 0, 1, 1], [], []>} : vector<8x128xf32>, vector<128x160xf32>, vector<8x160xf32> -> vector<8x160xf32>
    %c1_31 = arith.constant 1 : index
    %c0_32 = arith.constant 0 : index
    %c0_33 = arith.constant 0 : index
    %36 = vector.load %arg5[%c1_31, %c0_32, %c0_33] : memref<4x10x8xf32, #tpu.memory_space<vmem>>, vector<1x10x8xf32>
    %37 = vector.shape_cast %36 : vector<1x10x8xf32> to vector<10x8xf32>
    %cst_34 = arith.constant dense<0.000000e+00> : vector<10x160xf32>
    %38 = tpu.matmul %37, %35, %cst_34 {dimension_numbers = #tpu.dot_dimension_numbers<[1], [0], [0], [1], [0, 0, 1, 1], [], []>} : vector<10x8xf32>, vector<8x160xf32>, vector<10x160xf32> -> vector<10x160xf32>
    %39 = arith.addf %32, %38 : vector<10x160xf32>
    %c2_35 = arith.constant 2 : index
    %c0_36 = arith.constant 0 : index
    %c0_37 = arith.constant 0 : index
    %40 = vector.load %arg4[%c2_35, %c0_36, %c0_37] : memref<4x128x160xf32, #tpu.memory_space<vmem>>, vector<1x128x160xf32>
    %41 = vector.shape_cast %40 : vector<1x128x160xf32> to vector<128x160xf32>
    %cst_38 = arith.constant dense<0.000000e+00> : vector<8x160xf32>
    %42 = tpu.matmul %26, %41, %cst_38 {dimension_numbers = #tpu.dot_dimension_numbers<[1], [0], [0], [1], [0, 0, 1, 1], [], []>} : vector<8x128xf32>, vector<128x160xf32>, vector<8x160xf32> -> vector<8x160xf32>
    %c2_39 = arith.constant 2 : index
    %c0_40 = arith.constant 0 : index
    %c0_41 = arith.constant 0 : index
    %43 = vector.load %arg5[%c2_39, %c0_40, %c0_41] : memref<4x10x8xf32, #tpu.memory_space<vmem>>, vector<1x10x8xf32>
    %44 = vector.shape_cast %43 : vector<1x10x8xf32> to vector<10x8xf32>
    %cst_42 = arith.constant dense<0.000000e+00> : vector<10x160xf32>
    %45 = tpu.matmul %44, %42, %cst_42 {dimension_numbers = #tpu.dot_dimension_numbers<[1], [0], [0], [1], [0, 0, 1, 1], [], []>} : vector<10x8xf32>, vector<8x160xf32>, vector<10x160xf32> -> vector<10x160xf32>
    %46 = arith.addf %39, %45 : vector<10x160xf32>
    %c3_43 = arith.constant 3 : index
    %c0_44 = arith.constant 0 : index
    %c0_45 = arith.constant 0 : index
    %47 = vector.load %arg4[%c3_43, %c0_44, %c0_45] : memref<4x128x160xf32, #tpu.memory_space<vmem>>, vector<1x128x160xf32>
    %48 = vector.shape_cast %47 : vector<1x128x160xf32> to vector<128x160xf32>
    %cst_46 = arith.constant dense<0.000000e+00> : vector<8x160xf32>
    %49 = tpu.matmul %26, %48, %cst_46 {dimension_numbers = #tpu.dot_dimension_numbers<[1], [0], [0], [1], [0, 0, 1, 1], [], []>} : vector<8x128xf32>, vector<128x160xf32>, vector<8x160xf32> -> vector<8x160xf32>
    %c3_47 = arith.constant 3 : index
    %c0_48 = arith.constant 0 : index
    %c0_49 = arith.constant 0 : index
    %50 = vector.load %arg5[%c3_47, %c0_48, %c0_49] : memref<4x10x8xf32, #tpu.memory_space<vmem>>, vector<1x10x8xf32>
    %51 = vector.shape_cast %50 : vector<1x10x8xf32> to vector<10x8xf32>
    %cst_50 = arith.constant dense<0.000000e+00> : vector<10x160xf32>
    %52 = tpu.matmul %51, %49, %cst_50 {dimension_numbers = #tpu.dot_dimension_numbers<[1], [0], [0], [1], [0, 0, 1, 1], [], []>} : vector<10x8xf32>, vector<8x160xf32>, vector<10x160xf32> -> vector<10x160xf32>
    %53 = arith.addf %46, %52 : vector<10x160xf32>
    %c0_51 = arith.constant 0 : index
    %c0_52 = arith.constant 0 : index
    %54 = vector.load %arg6[%c0_51, %c0_52] : memref<1x160xf32, #tpu.memory_space<vmem>>, vector<1x160xf32>
    %55 = vector.broadcast %54 : vector<1x160xf32> to vector<10x160xf32>
    %56 = arith.addf %53, %55 : vector<10x160xf32>
    %cst_53 = arith.constant 0.000000e+00 : f32
    %57 = vector.broadcast %cst_53 : f32 to vector<10x160xf32>
    %58 = arith.maximumf %56, %57 : vector<10x160xf32>
    %c0_54 = arith.constant 0 : index
    %c0_55 = arith.constant 0 : index
    %c0_56 = arith.constant 0 : index
    %59 = vector.load %arg7[%c0_54, %c0_55, %c0_56] : memref<4x160x256xf32, #tpu.memory_space<vmem>>, vector<1x160x256xf32>
    %60 = vector.shape_cast %59 : vector<1x160x256xf32> to vector<160x256xf32>
    %cst_57 = arith.constant dense<0.000000e+00> : vector<10x256xf32>
    %61 = tpu.matmul %58, %60, %cst_57 {dimension_numbers = #tpu.dot_dimension_numbers<[1], [0], [0], [1], [0, 0, 1, 1], [], []>} : vector<10x160xf32>, vector<160x256xf32>, vector<10x256xf32> -> vector<10x256xf32>
    %c0_58 = arith.constant 0 : index
    %c0_59 = arith.constant 0 : index
    %c0_60 = arith.constant 0 : index
    %62 = vector.load %arg8[%c0_58, %c0_59, %c0_60] : memref<4x16x10xf32, #tpu.memory_space<vmem>>, vector<1x16x10xf32>
    %63 = vector.shape_cast %62 : vector<1x16x10xf32> to vector<16x10xf32>
    %cst_61 = arith.constant dense<0.000000e+00> : vector<16x256xf32>
    %64 = tpu.matmul %63, %61, %cst_61 {dimension_numbers = #tpu.dot_dimension_numbers<[1], [0], [0], [1], [0, 0, 1, 1], [], []>} : vector<16x10xf32>, vector<10x256xf32>, vector<16x256xf32> -> vector<16x256xf32>
    %c1_62 = arith.constant 1 : index
    %c0_63 = arith.constant 0 : index
    %c0_64 = arith.constant 0 : index
    %65 = vector.load %arg7[%c1_62, %c0_63, %c0_64] : memref<4x160x256xf32, #tpu.memory_space<vmem>>, vector<1x160x256xf32>
    %66 = vector.shape_cast %65 : vector<1x160x256xf32> to vector<160x256xf32>
    %cst_65 = arith.constant dense<0.000000e+00> : vector<10x256xf32>
    %67 = tpu.matmul %58, %66, %cst_65 {dimension_numbers = #tpu.dot_dimension_numbers<[1], [0], [0], [1], [0, 0, 1, 1], [], []>} : vector<10x160xf32>, vector<160x256xf32>, vector<10x256xf32> -> vector<10x256xf32>
    %c1_66 = arith.constant 1 : index
    %c0_67 = arith.constant 0 : index
    %c0_68 = arith.constant 0 : index
    %68 = vector.load %arg8[%c1_66, %c0_67, %c0_68] : memref<4x16x10xf32, #tpu.memory_space<vmem>>, vector<1x16x10xf32>
    %69 = vector.shape_cast %68 : vector<1x16x10xf32> to vector<16x10xf32>
    %cst_69 = arith.constant dense<0.000000e+00> : vector<16x256xf32>
    %70 = tpu.matmul %69, %67, %cst_69 {dimension_numbers = #tpu.dot_dimension_numbers<[1], [0], [0], [1], [0, 0, 1, 1], [], []>} : vector<16x10xf32>, vector<10x256xf32>, vector<16x256xf32> -> vector<16x256xf32>
    %71 = arith.addf %64, %70 : vector<16x256xf32>
    %c2_70 = arith.constant 2 : index
    %c0_71 = arith.constant 0 : index
    %c0_72 = arith.constant 0 : index
    %72 = vector.load %arg7[%c2_70, %c0_71, %c0_72] : memref<4x160x256xf32, #tpu.memory_space<vmem>>, vector<1x160x256xf32>
    %73 = vector.shape_cast %72 : vector<1x160x256xf32> to vector<160x256xf32>
    %cst_73 = arith.constant dense<0.000000e+00> : vector<10x256xf32>
    %74 = tpu.matmul %58, %73, %cst_73 {dimension_numbers = #tpu.dot_dimension_numbers<[1], [0], [0], [1], [0, 0, 1, 1], [], []>} : vector<10x160xf32>, vector<160x256xf32>, vector<10x256xf32> -> vector<10x256xf32>
    %c2_74 = arith.constant 2 : index
    %c0_75 = arith.constant 0 : index
    %c0_76 = arith.constant 0 : index
    %75 = vector.load %arg8[%c2_74, %c0_75, %c0_76] : memref<4x16x10xf32, #tpu.memory_space<vmem>>, vector<1x16x10xf32>
    %76 = vector.shape_cast %75 : vector<1x16x10xf32> to vector<16x10xf32>
    %cst_77 = arith.constant dense<0.000000e+00> : vector<16x256xf32>
    %77 = tpu.matmul %76, %74, %cst_77 {dimension_numbers = #tpu.dot_dimension_numbers<[1], [0], [0], [1], [0, 0, 1, 1], [], []>} : vector<16x10xf32>, vector<10x256xf32>, vector<16x256xf32> -> vector<16x256xf32>
    %78 = arith.addf %71, %77 : vector<16x256xf32>
    %c3_78 = arith.constant 3 : index
    %c0_79 = arith.constant 0 : index
    %c0_80 = arith.constant 0 : index
    %79 = vector.load %arg7[%c3_78, %c0_79, %c0_80] : memref<4x160x256xf32, #tpu.memory_space<vmem>>, vector<1x160x256xf32>
    %80 = vector.shape_cast %79 : vector<1x160x256xf32> to vector<160x256xf32>
    %cst_81 = arith.constant dense<0.000000e+00> : vector<10x256xf32>
    %81 = tpu.matmul %58, %80, %cst_81 {dimension_numbers = #tpu.dot_dimension_numbers<[1], [0], [0], [1], [0, 0, 1, 1], [], []>} : vector<10x160xf32>, vector<160x256xf32>, vector<10x256xf32> -> vector<10x256xf32>
    %c3_82 = arith.constant 3 : index
    %c0_83 = arith.constant 0 : index
    %c0_84 = arith.constant 0 : index
    %82 = vector.load %arg8[%c3_82, %c0_83, %c0_84] : memref<4x16x10xf32, #tpu.memory_space<vmem>>, vector<1x16x10xf32>
    %83 = vector.shape_cast %82 : vector<1x16x10xf32> to vector<16x10xf32>
    %cst_85 = arith.constant dense<0.000000e+00> : vector<16x256xf32>
    %84 = tpu.matmul %83, %81, %cst_85 {dimension_numbers = #tpu.dot_dimension_numbers<[1], [0], [0], [1], [0, 0, 1, 1], [], []>} : vector<16x10xf32>, vector<10x256xf32>, vector<16x256xf32> -> vector<16x256xf32>
    %85 = arith.addf %78, %84 : vector<16x256xf32>
    %c0_86 = arith.constant 0 : index
    %c0_87 = arith.constant 0 : index
    %86 = vector.load %arg9[%c0_86, %c0_87] : memref<1x256xf32, #tpu.memory_space<vmem>>, vector<1x256xf32>
    %87 = vector.broadcast %86 : vector<1x256xf32> to vector<16x256xf32>
    %88 = arith.addf %85, %87 : vector<16x256xf32>
    %cst_88 = arith.constant 0.000000e+00 : f32
    %89 = vector.broadcast %cst_88 : f32 to vector<16x256xf32>
    %90 = arith.maximumf %88, %89 : vector<16x256xf32>
    %c0_89 = arith.constant 0 : index
    %c0_90 = arith.constant 0 : index
    %c0_91 = arith.constant 0 : index
    %91 = vector.load %arg10[%c0_89, %c0_90, %c0_91] : memref<4x256x48xf32, #tpu.memory_space<vmem>>, vector<1x256x48xf32>
    %92 = vector.shape_cast %91 : vector<1x256x48xf32> to vector<256x48xf32>
    %cst_92 = arith.constant dense<0.000000e+00> : vector<16x48xf32>
    %93 = tpu.matmul %90, %92, %cst_92 {dimension_numbers = #tpu.dot_dimension_numbers<[1], [0], [0], [1], [0, 0, 1, 1], [], []>} : vector<16x256xf32>, vector<256x48xf32>, vector<16x48xf32> -> vector<16x48xf32>
    %c0_93 = arith.constant 0 : index
    %c0_94 = arith.constant 0 : index
    %c0_95 = arith.constant 0 : index
    %94 = vector.load %arg11[%c0_93, %c0_94, %c0_95] : memref<4x32x16xf32, #tpu.memory_space<vmem>>, vector<1x32x16xf32>
    %95 = vector.shape_cast %94 : vector<1x32x16xf32> to vector<32x16xf32>
    %cst_96 = arith.constant dense<0.000000e+00> : vector<32x48xf32>
    %96 = tpu.matmul %95, %93, %cst_96 {dimension_numbers = #tpu.dot_dimension_numbers<[1], [0], [0], [1], [0, 0, 1, 1], [], []>} : vector<32x16xf32>, vector<16x48xf32>, vector<32x48xf32> -> vector<32x48xf32>
    %c1_97 = arith.constant 1 : index
    %c0_98 = arith.constant 0 : index
    %c0_99 = arith.constant 0 : index
    %97 = vector.load %arg10[%c1_97, %c0_98, %c0_99] : memref<4x256x48xf32, #tpu.memory_space<vmem>>, vector<1x256x48xf32>
    %98 = vector.shape_cast %97 : vector<1x256x48xf32> to vector<256x48xf32>
    %cst_100 = arith.constant dense<0.000000e+00> : vector<16x48xf32>
    %99 = tpu.matmul %90, %98, %cst_100 {dimension_numbers = #tpu.dot_dimension_numbers<[1], [0], [0], [1], [0, 0, 1, 1], [], []>} : vector<16x256xf32>, vector<256x48xf32>, vector<16x48xf32> -> vector<16x48xf32>
    %c1_101 = arith.constant 1 : index
    %c0_102 = arith.constant 0 : index
    %c0_103 = arith.constant 0 : index
    %100 = vector.load %arg11[%c1_101, %c0_102, %c0_103] : memref<4x32x16xf32, #tpu.memory_space<vmem>>, vector<1x32x16xf32>
    %101 = vector.shape_cast %100 : vector<1x32x16xf32> to vector<32x16xf32>
    %cst_104 = arith.constant dense<0.000000e+00> : vector<32x48xf32>
    %102 = tpu.matmul %101, %99, %cst_104 {dimension_numbers = #tpu.dot_dimension_numbers<[1], [0], [0], [1], [0, 0, 1, 1], [], []>} : vector<32x16xf32>, vector<16x48xf32>, vector<32x48xf32> -> vector<32x48xf32>
    %103 = arith.addf %96, %102 : vector<32x48xf32>
    %c2_105 = arith.constant 2 : index
    %c0_106 = arith.constant 0 : index
    %c0_107 = arith.constant 0 : index
    %104 = vector.load %arg10[%c2_105, %c0_106, %c0_107] : memref<4x256x48xf32, #tpu.memory_space<vmem>>, vector<1x256x48xf32>
    %105 = vector.shape_cast %104 : vector<1x256x48xf32> to vector<256x48xf32>
    %cst_108 = arith.constant dense<0.000000e+00> : vector<16x48xf32>
    %106 = tpu.matmul %90, %105, %cst_108 {dimension_numbers = #tpu.dot_dimension_numbers<[1], [0], [0], [1], [0, 0, 1, 1], [], []>} : vector<16x256xf32>, vector<256x48xf32>, vector<16x48xf32> -> vector<16x48xf32>
    %c2_109 = arith.constant 2 : index
    %c0_110 = arith.constant 0 : index
    %c0_111 = arith.constant 0 : index
    %107 = vector.load %arg11[%c2_109, %c0_110, %c0_111] : memref<4x32x16xf32, #tpu.memory_space<vmem>>, vector<1x32x16xf32>
    %108 = vector.shape_cast %107 : vector<1x32x16xf32> to vector<32x16xf32>
    %cst_112 = arith.constant dense<0.000000e+00> : vector<32x48xf32>
    %109 = tpu.matmul %108, %106, %cst_112 {dimension_numbers = #tpu.dot_dimension_numbers<[1], [0], [0], [1], [0, 0, 1, 1], [], []>} : vector<32x16xf32>, vector<16x48xf32>, vector<32x48xf32> -> vector<32x48xf32>
    %110 = arith.addf %103, %109 : vector<32x48xf32>
    %c3_113 = arith.constant 3 : index
    %c0_114 = arith.constant 0 : index
    %c0_115 = arith.constant 0 : index
    %111 = vector.load %arg10[%c3_113, %c0_114, %c0_115] : memref<4x256x48xf32, #tpu.memory_space<vmem>>, vector<1x256x48xf32>
    %112 = vector.shape_cast %111 : vector<1x256x48xf32> to vector<256x48xf32>
    %cst_116 = arith.constant dense<0.000000e+00> : vector<16x48xf32>
    %113 = tpu.matmul %90, %112, %cst_116 {dimension_numbers = #tpu.dot_dimension_numbers<[1], [0], [0], [1], [0, 0, 1, 1], [], []>} : vector<16x256xf32>, vector<256x48xf32>, vector<16x48xf32> -> vector<16x48xf32>
    %c3_117 = arith.constant 3 : index
    %c0_118 = arith.constant 0 : index
    %c0_119 = arith.constant 0 : index
    %114 = vector.load %arg11[%c3_117, %c0_118, %c0_119] : memref<4x32x16xf32, #tpu.memory_space<vmem>>, vector<1x32x16xf32>
    %115 = vector.shape_cast %114 : vector<1x32x16xf32> to vector<32x16xf32>
    %cst_120 = arith.constant dense<0.000000e+00> : vector<32x48xf32>
    %116 = tpu.matmul %115, %113, %cst_120 {dimension_numbers = #tpu.dot_dimension_numbers<[1], [0], [0], [1], [0, 0, 1, 1], [], []>} : vector<32x16xf32>, vector<16x48xf32>, vector<32x48xf32> -> vector<32x48xf32>
    %117 = arith.addf %110, %116 : vector<32x48xf32>
    %c0_121 = arith.constant 0 : index
    %c0_122 = arith.constant 0 : index
    %118 = vector.load %arg12[%c0_121, %c0_122] : memref<1x48xf32, #tpu.memory_space<vmem>>, vector<1x48xf32>
    %119 = vector.broadcast %118 : vector<1x48xf32> to vector<32x48xf32>
    %120 = arith.addf %117, %119 : vector<32x48xf32>
    %121 = arith.negf %120 : vector<32x48xf32>
    %122 = math.exp %121 : vector<32x48xf32>
    %cst_123 = arith.constant 1.000000e+00 : f32
    %123 = vector.broadcast %cst_123 : f32 to vector<32x48xf32>
    %124 = arith.addf %123, %122 : vector<32x48xf32>
    %125 = arith.divf %123, %124 : vector<32x48xf32>
    %c0_124 = arith.constant 0 : index
    %c0_125 = arith.constant 0 : index
    %126 = vector.load %arg13[%c0_124, %c0_125] : memref<32x48xf32, #tpu.memory_space<vmem>>, vector<32x48xf32>
    tpu.vector_store %arg13[%c0_124, %c0_125], %125 {strides = array<i32>} : memref<32x48xf32, #tpu.memory_space<vmem>>, vector<32x48xf32>,
    return
  }
}

</mosaic_0001>

<llo_original>
// kernel: tile.28
$region0: #{tile.28}
  #allocation0 [shape = 's32[1]{0}', space=sflag, size = 0x4, scoped, tag = 'scoped memory for tile.28']
  %s0 = inlined_call_operand.vmem [shape: f32[3], index: 0, kind: input, shape index: {}]
  %s1 = inlined_call_operand.vmem [shape: f32[16,3], index: 1, kind: output, shape index: {}]
  // Predicated region
  $region2: #{tile.28} parent=0 // pred_check
    _
  $region3: #{tile.28} parent=0 // pred_check_branch
    %3 = sbr.rel (0) target = $region5
  $region4: #{tile.28} parent=0 // pred_region
    _
  $region5: #{tile.28} parent=0 // pred_fallthru
    _
  %v4 = vld [vmem:[%s0] ss:$0 sm:$0xff]
  %5 = vst [vmem:[%s1] sm:$0xff] %v4
  %s6 = scalar_lea.vmem %s1, 8
  %7 = vst [vmem:[%s6] sm:$0xff] %v4

// kernel: tile.29
$region0: #{tile.29}
  %s0 = inlined_call_operand.vmem [shape: f32[16,3], index: 0, kind: input, shape index: {}]
  %s1 = inlined_call_operand.vmem [shape: f32[1,48], index: 1, kind: output, shape index: {}]
  $region1: #{tile.29} parent=0
    #allocation0 [shape = 'u8[4096]{0}', space=vmem, size = 0x1000, scoped, tag = 'scoped mem for output reshape']
    %v2 = vld [vmem:[%s0] sm:$0x1]
    %vm3 = vcmask 23552
    %4 = vst.msk [vmem:[#allocation0] sm:$0x1] %vm3, %v2
    %s5 = scalar_lea.vmem %s0, 15
    %v6 = vld [vmem:[%s5] sm:$0x1]
    %7 = vrot.lane.b32.xlu0 %v6, 45
    %v8 = vpop.permute.xlu0 %7
    %vm9 = vcmask 392552
    %10 = vst.msk [vmem:[#allocation0] sm:$0x1] %vm9, %v8
    %s11 = scalar_lea.vmem %s0, 14
    %v12 = vld [vmem:[%s11] sm:$0x1]
    %13 = vrot.lane.b32.xlu0 %v12, 42
    %v14 = vpop.permute.xlu0 %13
    %vm15 = vcmask 367952
    %16 = vst.msk [vmem:[#allocation0] sm:$0x1] %vm15, %v14
    %s17 = scalar_lea.vmem %s0, 13
    %v18 = vld [vmem:[%s17] sm:$0x1]
    %19 = vrot.lane.b32.xlu0 %v18, 39
    %v20 = vpop.permute.xlu0 %19
    %vm21 = vcmask 343352
    %22 = vst.msk [vmem:[#allocation0] sm:$0x1] %vm21, %v20
    %s23 = scalar_lea.vmem %s0, 12
    %v24 = vld [vmem:[%s23] sm:$0x1]
    %25 = vrot.lane.b32.xlu0 %v24, 36
    %v26 = vpop.permute.xlu0 %25
    %vm27 = vcmask 318752
    %28 = vst.msk [vmem:[#allocation0] sm:$0x1] %vm27, %v26
    %s29 = scalar_lea.vmem %s0, 11
    %v30 = vld [vmem:[%s29] sm:$0x1]
    %31 = vrot.lane.b32.xlu0 %v30, 33
    %v32 = vpop.permute.xlu0 %31
    %vm33 = vcmask 294152
    %34 = vst.msk [vmem:[#allocation0] sm:$0x1] %vm33, %v32
    %s35 = scalar_lea.vmem %s0, 10
    %v36 = vld [vmem:[%s35] sm:$0x1]
    %37 = vrot.lane.b32.xlu0 %v36, 30
    %v38 = vpop.permute.xlu0 %37
    %vm39 = vcmask 269552
    %40 = vst.msk [vmem:[#allocation0] sm:$0x1] %vm39, %v38
    %s41 = scalar_lea.vmem %s0, 9
    %v42 = vld [vmem:[%s41] sm:$0x1]
    %43 = vrot.lane.b32.xlu0 %v42, 27
    %v44 = vpop.permute.xlu0 %43
    %vm45 = vcmask 244952
    %46 = vst.msk [vmem:[#allocation0] sm:$0x1] %vm45, %v44
    %s47 = scalar_lea.vmem %s0, 8
    %v48 = vld [vmem:[%s47] sm:$0x1]
    %49 = vrot.lane.b32.xlu0 %v48, 24
    %v50 = vpop.permute.xlu0 %49
    %vm51 = vcmask 220352
    %52 = vst.msk [vmem:[#allocation0] sm:$0x1] %vm51, %v50
    %s53 = scalar_lea.vmem %s0, 7
    %v54 = vld [vmem:[%s53] sm:$0x1]
    %55 = vrot.lane.b32.xlu0 %v54, 21
    %v56 = vpop.permute.xlu0 %55
    %vm57 = vcmask 195752
    %58 = vst.msk [vmem:[#allocation0] sm:$0x1] %vm57, %v56
    %s59 = scalar_lea.vmem %s0, 6
    %v60 = vld [vmem:[%s59] sm:$0x1]
    %61 = vrot.lane.b32.xlu0 %v60, 18
    %v62 = vpop.permute.xlu0 %61
    %vm63 = vcmask 171152
    %64 = vst.msk [vmem:[#allocation0] sm:$0x1] %vm63, %v62
    %s65 = scalar_lea.vmem %s0, 5
    %v66 = vld [vmem:[%s65] sm:$0x1]
    %67 = vrot.lane.b32.xlu0 %v66, 15
    %v68 = vpop.permute.xlu0 %67
    %vm69 = vcmask 146552
    %70 = vst.msk [vmem:[#allocation0] sm:$0x1] %vm69, %v68
    %s71 = scalar_lea.vmem %s0, 4
    %v72 = vld [vmem:[%s71] sm:$0x1]
    %73 = vrot.lane.b32.xlu0 %v72, 12
    %v74 = vpop.permute.xlu0 %73
    %vm75 = vcmask 121952
    %76 = vst.msk [vmem:[#allocation0] sm:$0x1] %vm75, %v74
    %s77 = scalar_lea.vmem %s0, 3
    %v78 = vld [vmem:[%s77] sm:$0x1]
    %79 = vrot.lane.b32.xlu0 %v78, 9
    %v80 = vpop.permute.xlu0 %79
    %vm81 = vcmask 97352
    %82 = vst.msk [vmem:[#allocation0] sm:$0x1] %vm81, %v80
    %s83 = scalar_lea.vmem %s0, 2
    %v84 = vld [vmem:[%s83] sm:$0x1]
    %85 = vrot.lane.b32.xlu0 %v84, 6
    %v86 = vpop.permute.xlu0 %85
    %vm87 = vcmask 72752
    %88 = vst.msk [vmem:[#allocation0] sm:$0x1] %vm87, %v86
    %s89 = scalar_lea.vmem %s0, 1
    %v90 = vld [vmem:[%s89] sm:$0x1]
    %91 = vrot.lane.b32.xlu0 %v90, 3
    %v92 = vpop.permute.xlu0 %91
    %vm93 = vcmask 48152
    %94 = vst.msk [vmem:[#allocation0] sm:$0x1] %vm93, %v92
    %s96 = ssub.s32 2, 1
    %v97 = vld [vmem:[#allocation0] sm:%s96]
    %s99 = ssub.s32 2, 1
    %100 = vst [vmem:[%s1] sm:%s99] %v97

// kernel: tile.18
$region0: #{tile.18}
  #allocation0 [shape = 's32[1]{0}', space=sflag, size = 0x4, scoped, tag = 'scoped memory for tile.18']
  %s0 = inlined_call_operand.vmem [shape: f32[32], index: 0, kind: input, shape index: {}]
  %s1 = inlined_call_operand.vmem [shape: f32[5,32], index: 1, kind: output, shape index: {}]
  // Predicated region
  $region2: #{tile.18} parent=0 // pred_check
    _
  $region3: #{tile.18} parent=0 // pred_check_branch
    %3 = sbr.rel (0) target = $region5
  $region4: #{tile.18} parent=0 // pred_region
    _
  $region5: #{tile.18} parent=0 // pred_fallthru
    _
  %v4 = vld [vmem:[%s0] ss:$0 sm:$0xff]
  %5 = vst [vmem:[%s1] sm:$0xff] %v4

// kernel: tile.19
$region0: #{tile.19}
  %s0 = inlined_call_operand.vmem [shape: f32[5,32], index: 0, kind: input, shape index: {}]
  %s1 = inlined_call_operand.vmem [shape: f32[1,160], index: 1, kind: output, shape index: {}]
  $region1: #{tile.19} parent=0
    #allocation0 [shape = 'u8[8192]{0}', space=vmem, size = 0x2000, scoped, tag = 'scoped mem for output reshape']
    %s2 = smov 3
    %v3 = vld [vmem:[%s0] ss:$4 sm:%s2]
    %vm4 = vcmask 261120
    %5 = vst.msk [vmem:[#allocation0] ss:$8 sm:$0x3] %vm4, %v3
    %s6 = scalar_lea.vmem %s0, 3
    %v7 = vld [vmem:[%s6] sm:$0x1]
    %8 = vrot.lane.b32.xlu0 %v7, 96
    %v9 = vpop.permute.xlu0 %8
    %vm10 = vcmask 1048320
    %11 = vst.msk [vmem:[#allocation0] sm:$0x1] %vm10, %v9
    %s12 = scalar_lea.vmem %s0, 2
    %v13 = vld [vmem:[%s12] sm:$0x1]
    %14 = vrot.lane.b32.xlu0 %v13, 64
    %v15 = vpop.permute.xlu0 %14
    %vm16 = vcmask 785920
    %17 = vst.msk [vmem:[#allocation0] sm:$0x1] %vm16, %v15
    %s18 = scalar_lea.vmem %s0, 1
    %v19 = vld [vmem:[%s18] sm:$0x1]
    %20 = vrot.lane.b32.xlu0 %v19, 32
    %v21 = vpop.permute.xlu0 %20
    %vm22 = vcmask 523520
    %23 = vst.msk [vmem:[#allocation0] sm:$0x1] %vm22, %v21
    %s25 = ssub.s32 2, 1
    %v26 = vld [vmem:[#allocation0] sm:%s25]
    %s28 = ssub.s32 2, 1
    %29 = vst [vmem:[%s1] sm:%s28] %v26
    %s30 = scalar_lea.vmem [#allocation0], 8
    %v31 = vld [vmem:[%s30] sm:%s25]
    %s33 = ssub.s32 2, 1
    %s34 = scalar_lea.vmem %s1, 1
    %35 = vst [vmem:[%s34] sm:%s33] %v31

// kernel: tile.23
$region0: #{tile.23}
  #allocation0 [shape = 's32[1]{0}', space=sflag, size = 0x4, scoped, tag = 'scoped memory for tile.23']
  %s0 = inlined_call_operand.vmem [shape: f32[32], index: 0, kind: input, shape index: {}]
  %s1 = inlined_call_operand.vmem [shape: f32[8,32], index: 1, kind: output, shape index: {}]
  // Predicated region
  $region2: #{tile.23} parent=0 // pred_check
    _
  $region3: #{tile.23} parent=0 // pred_check_branch
    %3 = sbr.rel (0) target = $region5
  $region4: #{tile.23} parent=0 // pred_region
    _
  $region5: #{tile.23} parent=0 // pred_fallthru
    _
  %v4 = vld [vmem:[%s0] ss:$0 sm:$0xff]
  %5 = vst [vmem:[%s1] sm:$0xff] %v4

// kernel: tile.24
$region0: #{tile.24}
  %s0 = inlined_call_operand.vmem [shape: f32[8,32], index: 0, kind: input, shape index: {}]
  %s1 = inlined_call_operand.vmem [shape: f32[1,256], index: 1, kind: output, shape index: {}]
  $region1: #{tile.24} parent=0
    #allocation0 [shape = 'u8[8192]{0}', space=vmem, size = 0x2000, scoped, tag = 'scoped mem for output reshape']
    %s2 = smov 3
    %v3 = vld [vmem:[%s0] ss:$4 sm:%s2]
    %vm4 = vcmask 261120
    %5 = vst.msk [vmem:[#allocation0] ss:$8 sm:$0x3] %vm4, %v3
    %s6 = scalar_lea.vmem %s0, 3
    %s7 = smov 3
    %v8 = vld [vmem:[%s6] ss:$4 sm:%s7]
    %9 = vrot.lane.b32.xlu0 %v8, 96
    %v10 = vpop.permute.xlu0 %9
    %vm11 = vcmask 1048320
    %12 = vst.msk [vmem:[#allocation0] ss:$8 sm:$0x3] %vm11, %v10
    %s13 = scalar_lea.vmem %s0, 2
    %s14 = smov 3
    %v15 = vld [vmem:[%s13] ss:$4 sm:%s14]
    %16 = vrot.lane.b32.xlu0 %v15, 64
    %v17 = vpop.permute.xlu0 %16
    %vm18 = vcmask 785920
    %19 = vst.msk [vmem:[#allocation0] ss:$8 sm:$0x3] %vm18, %v17
    %s20 = scalar_lea.vmem %s0, 1
    %s21 = smov 3
    %v22 = vld [vmem:[%s20] ss:$4 sm:%s21]
    %23 = vrot.lane.b32.xlu0 %v22, 32
    %v24 = vpop.permute.xlu0 %23
    %vm25 = vcmask 523520
    %26 = vst.msk [vmem:[#allocation0] ss:$8 sm:$0x3] %vm25, %v24
    %s28 = ssub.s32 2, 1
    %v29 = vld [vmem:[#allocation0] sm:%s28]
    %s31 = ssub.s32 2, 1
    %32 = vst [vmem:[%s1] sm:%s31] %v29
    %s33 = scalar_lea.vmem [#allocation0], 8
    %v34 = vld [vmem:[%s33] sm:%s28]
    %s36 = ssub.s32 2, 1
    %s37 = scalar_lea.vmem %s1, 1
    %38 = vst [vmem:[%s37] sm:%s36] %v34

// kernel: decoder_forward.1
$region0: #{decoder_forward.1}
  #allocation0 [shape = 'u32[]', space=smem, size = 0x4, offset = 0x4, fixed_abs, tag = 'smem constant byte address 0x4 - core index']
  #allocation1 [shape = 'u32[72,128]{1,0:T(1,128)}', space=vmem, size = 0x9000, scoped, tag = 'internal scratch']
  %s0 = inlined_call_operand.vmem [shape: f32[2,8], index: 0, kind: input, shape index: {}]
  %s1 = inlined_call_operand.vmem [shape: f32[8,512], index: 1, kind: input, shape index: {}]
  %s2 = inlined_call_operand.vmem [shape: f32[1,512], index: 2, kind: input, shape index: {}]
  %s3 = inlined_call_operand.vmem [shape: f32[4,8,2], index: 3, kind: input, shape index: {}]
  %s4 = inlined_call_operand.vmem [shape: f32[4,128,160], index: 4, kind: input, shape index: {}]
  %s5 = inlined_call_operand.vmem [shape: f32[4,10,8], index: 5, kind: input, shape index: {}]
  %s6 = inlined_call_operand.vmem [shape: f32[1,160], index: 6, kind: input, shape index: {}]
  %s7 = inlined_call_operand.vmem [shape: f32[4,160,256], index: 7, kind: input, shape index: {}]
  %s8 = inlined_call_operand.vmem [shape: f32[4,16,10], index: 8, kind: input, shape index: {}]
  %s9 = inlined_call_operand.vmem [shape: f32[1,256], index: 9, kind: input, shape index: {}]
  %s10 = inlined_call_operand.vmem [shape: f32[4,256,48], index: 10, kind: input, shape index: {}]
  %s11 = inlined_call_operand.vmem [shape: f32[4,32,16], index: 11, kind: input, shape index: {}]
  %s12 = inlined_call_operand.vmem [shape: f32[1,48], index: 12, kind: input, shape index: {}]
  %s13 = inlined_call_operand.vmem [shape: f32[32,48], index: 13, kind: output, shape index: {}]
  %s14 = sld [smem:[#allocation0]]
  $region62: #{decoder_forward.1} parent=0
    _
  %s16 = ssub.s32 1, %s14
  %s17 = scalar_select 0, %s16, %s14
  // Predicated region
  $region2: #{decoder_forward.1} parent=0 // pred_check
    _
  $region3: #{decoder_forward.1} parent=0 // pred_check_branch
    %19 = sbr.rel (0) target = $region5
  $region4: #{decoder_forward.1} parent=0 // pred_region
    _
  $region5: #{decoder_forward.1} parent=0 // pred_fallthru
    _
  // Predicated region
  $region6: #{decoder_forward.1} parent=0 // pred_check
    _
  $region7: #{decoder_forward.1} parent=0 // pred_check_branch
    %21 = sbr.rel (0) target = $region9
  $region8: #{decoder_forward.1} parent=0 // pred_region
    _
  $region9: #{decoder_forward.1} parent=0 // pred_fallthru
    _
  // Predicated region
  $region10: #{decoder_forward.1} parent=0 // pred_check
    _
  $region11: #{decoder_forward.1} parent=0 // pred_check_branch
    %23 = sbr.rel (0) target = $region13
  $region12: #{decoder_forward.1} parent=0 // pred_region
    _
  $region13: #{decoder_forward.1} parent=0 // pred_fallthru
    _
  // Predicated region
  $region14: #{decoder_forward.1} parent=0 // pred_check
    _
  $region15: #{decoder_forward.1} parent=0 // pred_check_branch
    %25 = sbr.rel (0) target = $region17
  $region16: #{decoder_forward.1} parent=0 // pred_region
    _
  $region17: #{decoder_forward.1} parent=0 // pred_fallthru
    _
  // Predicated region
  $region18: #{decoder_forward.1} parent=0 // pred_check
    _
  $region19: #{decoder_forward.1} parent=0 // pred_check_branch
    %27 = sbr.rel (0) target = $region21
  $region20: #{decoder_forward.1} parent=0 // pred_region
    _
  $region21: #{decoder_forward.1} parent=0 // pred_fallthru
    _
  // Predicated region
  $region22: #{decoder_forward.1} parent=0 // pred_check
    _
  $region23: #{decoder_forward.1} parent=0 // pred_check_branch
    %29 = sbr.rel (0) target = $region25
  $region24: #{decoder_forward.1} parent=0 // pred_region
    _
  $region25: #{decoder_forward.1} parent=0 // pred_fallthru
    _
  // Predicated region
  $region26: #{decoder_forward.1} parent=0 // pred_check
    _
  $region27: #{decoder_forward.1} parent=0 // pred_check_branch
    %31 = sbr.rel (0) target = $region29
  $region28: #{decoder_forward.1} parent=0 // pred_region
    _
  $region29: #{decoder_forward.1} parent=0 // pred_fallthru
    _
  // Predicated region
  $region30: #{decoder_forward.1} parent=0 // pred_check
    _
  $region31: #{decoder_forward.1} parent=0 // pred_check_branch
    %33 = sbr.rel (0) target = $region33
  $region32: #{decoder_forward.1} parent=0 // pred_region
    _
  $region33: #{decoder_forward.1} parent=0 // pred_fallthru
    _
  // Predicated region
  $region34: #{decoder_forward.1} parent=0 // pred_check
    _
  $region35: #{decoder_forward.1} parent=0 // pred_check_branch
    %35 = sbr.rel (0) target = $region37
  $region36: #{decoder_forward.1} parent=0 // pred_region
    _
  $region37: #{decoder_forward.1} parent=0 // pred_fallthru
    _
  // Predicated region
  $region38: #{decoder_forward.1} parent=0 // pred_check
    _
  $region39: #{decoder_forward.1} parent=0 // pred_check_branch
    %37 = sbr.rel (0) target = $region41
  $region40: #{decoder_forward.1} parent=0 // pred_region
    _
  $region41: #{decoder_forward.1} parent=0 // pred_fallthru
    _
  // Predicated region
  $region42: #{decoder_forward.1} parent=0 // pred_check
    _
  $region43: #{decoder_forward.1} parent=0 // pred_check_branch
    %39 = sbr.rel (0) target = $region45
  $region44: #{decoder_forward.1} parent=0 // pred_region
    _
  $region45: #{decoder_forward.1} parent=0 // pred_fallthru
    _
  // Predicated region
  $region46: #{decoder_forward.1} parent=0 // pred_check
    _
  $region47: #{decoder_forward.1} parent=0 // pred_check_branch
    %41 = sbr.rel (0) target = $region49
  $region48: #{decoder_forward.1} parent=0 // pred_region
    _
  $region49: #{decoder_forward.1} parent=0 // pred_fallthru
    _
  // Predicated region
  $region50: #{decoder_forward.1} parent=0 // pred_check
    _
  $region51: #{decoder_forward.1} parent=0 // pred_check_branch
    %43 = sbr.rel (0) target = $region53
  $region52: #{decoder_forward.1} parent=0 // pred_region
    _
  $region53: #{decoder_forward.1} parent=0 // pred_fallthru
    _
  %v44 = vld [vmem:[%s0] sm:$0x3]
  %v45 = vld [vmem:[%s1] sm:$0xff]
  %v46 = vld [vmem:[%s1 + $0x8] sm:$0xff]
  %v47 = vld [vmem:[%s1 + $0x10] sm:$0xff]
  %v48 = vld [vmem:[%s1 + $0x18] sm:$0xff]
  %v49 = vld [vmem:[%s2] sm:$0xf]
  %v51 = vperm.slane %v49, 0
  %v52 = vperm.slane %v49, 1
  %v53 = vperm.slane %v49, 2
  %v54 = vperm.slane %v49, 3
  %vm59 = vcmask 64512
  %v61 = vsel %vm59, %v44, 0
  %63 = vmatpush.msra.mxu0 0.0
  %64 = vmatpush.msra.mxu0 0.0
  %65 = vmatpush.msra.mxu0 0.0
  %66 = vmatpush.msra.mxu0 0.0
  %67 = vmatpush.msra.mxu0 0.0
  %68 = vmatpush.msra.mxu0 0.0
  %69 = vmatpush.msra.mxu0 0.0
  %70 = vmatpush.msra.mxu0 0.0
  %71 = vmatpush.msra.mxu0 0.0
  %72 = vmatpush.msra.mxu0 0.0
  %73 = vmatpush.msra.mxu0 0.0
  %74 = vmatpush.msra.mxu0 0.0
  %75 = vmatpush.msra.mxu0 0.0
  %76 = vmatpush.msra.mxu0 0.0
  %77 = vmatpush.msra.mxu0 0.0
  %78 = vmatpush.msra.mxu0 %v45
  %79 = vmatmul.f32.gmra.mxu0 %v61
  %v80 = vpop.f32.mrf.mxu0
  %v81 = vadd.f32 %v51, %v80
  %82 = vdwg.mxu0
  %83 = vmatpush.msra.mxu0 0.0
  %84 = vmatpush.msra.mxu0 0.0
  %85 = vmatpush.msra.mxu0 0.0
  %86 = vmatpush.msra.mxu0 0.0
  %87 = vmatpush.msra.mxu0 0.0
  %88 = vmatpush.msra.mxu0 0.0
  %89 = vmatpush.msra.mxu0 0.0
  %90 = vmatpush.msra.mxu0 0.0
  %91 = vmatpush.msra.mxu0 0.0
  %92 = vmatpush.msra.mxu0 0.0
  %93 = vmatpush.msra.mxu0 0.0
  %94 = vmatpush.msra.mxu0 0.0
  %95 = vmatpush.msra.mxu0 0.0
  %96 = vmatpush.msra.mxu0 0.0
  %97 = vmatpush.msra.mxu0 0.0
  %98 = vmatpush.msra.mxu0 %v46
  %99 = vmatmul.f32.gmra.mxu0 %v61
  %v100 = vpop.f32.mrf.mxu0
  %v101 = vadd.f32 %v52, %v100
  %102 = vdwg.mxu0
  %103 = vmatpush.msra.mxu0 0.0
  %104 = vmatpush.msra.mxu0 0.0
  %105 = vmatpush.msra.mxu0 0.0
  %106 = vmatpush.msra.mxu0 0.0
  %107 = vmatpush.msra.mxu0 0.0
  %108 = vmatpush.msra.mxu0 0.0
  %109 = vmatpush.msra.mxu0 0.0
  %110 = vmatpush.msra.mxu0 0.0
  %111 = vmatpush.msra.mxu0 0.0
  %112 = vmatpush.msra.mxu0 0.0
  %113 = vmatpush.msra.mxu0 0.0
  %114 = vmatpush.msra.mxu0 0.0
  %115 = vmatpush.msra.mxu0 0.0
  %116 = vmatpush.msra.mxu0 0.0
  %117 = vmatpush.msra.mxu0 0.0
  %118 = vmatpush.msra.mxu0 %v47
  %119 = vmatmul.f32.gmra.mxu0 %v61
  %v120 = vpop.f32.mrf.mxu0
  %v121 = vadd.f32 %v53, %v120
  %122 = vdwg.mxu0
  %123 = vmatpush.msra.mxu0 0.0
  %124 = vmatpush.msra.mxu0 0.0
  %125 = vmatpush.msra.mxu0 0.0
  %126 = vmatpush.msra.mxu0 0.0
  %127 = vmatpush.msra.mxu0 0.0
  %128 = vmatpush.msra.mxu0 0.0
  %129 = vmatpush.msra.mxu0 0.0
  %130 = vmatpush.msra.mxu0 0.0
  %131 = vmatpush.msra.mxu0 0.0
  %132 = vmatpush.msra.mxu0 0.0
  %133 = vmatpush.msra.mxu0 0.0
  %134 = vmatpush.msra.mxu0 0.0
  %135 = vmatpush.msra.mxu0 0.0
  %136 = vmatpush.msra.mxu0 0.0
  %137 = vmatpush.msra.mxu0 0.0
  %138 = vmatpush.msra.mxu0 %v48
  %139 = vmatmul.f32.gmra.mxu0 %v61
  %v140 = vpop.f32.mrf.mxu0
  %v141 = vadd.f32 %v54, %v140
  %142 = vdwg.mxu0
  %v143 = vmax.f32 %v81, 0.0
  %v144 = vmax.f32 %v101, 0.0
  %v145 = vmax.f32 %v121, 0.0
  %v146 = vmax.f32 %v141, 0.0
  %v147 = vld [vmem:[%s3] sm:$0xff]
  %s148 = scalar_lea.vmem %s3, 8
  %v149 = vld [vmem:[%s148] sm:$0xff]
  %vm150 = vcmask 15360
  %v152 = vsel %vm150, %v149, 0
  %vm154 = vcmask 1041408
  %v156 = vsel %vm154, %v144, 0
  %158 = vmatpush.msra.mxu0 0.0
  %159 = vmatpush.msra.mxu0 0.0
  %160 = vmatpush.msra.mxu0 0.0
  %161 = vmatpush.msra.mxu0 0.0
  %162 = vmatpush.msra.mxu0 0.0
  %163 = vmatpush.msra.mxu0 0.0
  %164 = vmatpush.msra.mxu0 0.0
  %165 = vmatpush.msra.mxu0 0.0
  %166 = vmatpush.msra.mxu0 0.0
  %167 = vmatpush.msra.mxu0 0.0
  %168 = vmatpush.msra.mxu0 0.0
  %169 = vmatpush.msra.mxu0 0.0
  %170 = vmatpush.msra.mxu0 0.0
  %171 = vmatpush.msra.mxu0 0.0
  %172 = vmatpush.msra.mxu0 0.0
  %173 = vmatpush.msra.mxu0 %v156
  %174 = vmatmul.f32.gmra.mxu0 %v152
  %v175 = vpop.f32.mrf.mxu0
  %v176 = vadd.f32 0.0, %v175
  %177 = vdwg.mxu0
  %v179 = vsel %vm150, %v147, 0
  %v182 = vsel %vm154, %v143, 0
  %184 = vmatpush.msra.mxu0 0.0
  %185 = vmatpush.msra.mxu0 0.0
  %186 = vmatpush.msra.mxu0 0.0
  %187 = vmatpush.msra.mxu0 0.0
  %188 = vmatpush.msra.mxu0 0.0
  %189 = vmatpush.msra.mxu0 0.0
  %190 = vmatpush.msra.mxu0 0.0
  %191 = vmatpush.msra.mxu0 0.0
  %192 = vmatpush.msra.mxu0 0.0
  %193 = vmatpush.msra.mxu0 0.0
  %194 = vmatpush.msra.mxu0 0.0
  %195 = vmatpush.msra.mxu0 0.0
  %196 = vmatpush.msra.mxu0 0.0
  %197 = vmatpush.msra.mxu0 0.0
  %198 = vmatpush.msra.mxu0 0.0
  %199 = vmatpush.msra.mxu0 %v182
  %200 = vmatmul.f32.gmra.mxu0 %v179
  %v201 = vpop.f32.mrf.mxu0
  %v202 = vadd.f32 %v176, %v201
  %203 = vdwg.mxu0
  %s204 = scalar_lea.vmem %s3, 16
  %v205 = vld [vmem:[%s204] sm:$0xff]
  %v207 = vsel %vm150, %v205, 0
  %v210 = vsel %vm154, %v145, 0
  %212 = vmatpush.msra.mxu0 0.0
  %213 = vmatpush.msra.mxu0 0.0
  %214 = vmatpush.msra.mxu0 0.0
  %215 = vmatpush.msra.mxu0 0.0
  %216 = vmatpush.msra.mxu0 0.0
  %217 = vmatpush.msra.mxu0 0.0
  %218 = vmatpush.msra.mxu0 0.0
  %219 = vmatpush.msra.mxu0 0.0
  %220 = vmatpush.msra.mxu0 0.0
  %221 = vmatpush.msra.mxu0 0.0
  %222 = vmatpush.msra.mxu0 0.0
  %223 = vmatpush.msra.mxu0 0.0
  %224 = vmatpush.msra.mxu0 0.0
  %225 = vmatpush.msra.mxu0 0.0
  %226 = vmatpush.msra.mxu0 0.0
  %227 = vmatpush.msra.mxu0 %v210
  %228 = vmatmul.f32.gmra.mxu0 %v207
  %v229 = vpop.f32.mrf.mxu0
  %v230 = vadd.f32 0.0, %v229
  %231 = vdwg.mxu0
  %v232 = vadd.f32 %v202, %v230
  %s233 = scalar_lea.vmem %s3, 24
  %v234 = vld [vmem:[%s233] sm:$0xff]
  %v236 = vsel %vm150, %v234, 0
  %v239 = vsel %vm154, %v146, 0
  %241 = vmatpush.msra.mxu0 0.0
  %242 = vmatpush.msra.mxu0 0.0
  %243 = vmatpush.msra.mxu0 0.0
  %244 = vmatpush.msra.mxu0 0.0
  %245 = vmatpush.msra.mxu0 0.0
  %246 = vmatpush.msra.mxu0 0.0
  %247 = vmatpush.msra.mxu0 0.0
  %248 = vmatpush.msra.mxu0 0.0
  %249 = vmatpush.msra.mxu0 0.0
  %250 = vmatpush.msra.mxu0 0.0
  %251 = vmatpush.msra.mxu0 0.0
  %252 = vmatpush.msra.mxu0 0.0
  %253 = vmatpush.msra.mxu0 0.0
  %254 = vmatpush.msra.mxu0 0.0
  %255 = vmatpush.msra.mxu0 0.0
  %256 = vmatpush.msra.mxu0 %v239
  %257 = vmatmul.f32.gmra.mxu0 %v236
  %v258 = vpop.f32.mrf.mxu0
  %v259 = vadd.f32 0.0, %v258
  %260 = vdwg.mxu0
  %v261 = vadd.f32 %v232, %v259
  %v262 = vld [vmem:[%s4] sm:$0xff]
  %v263 = vld [vmem:[%s4 + $0x8] sm:$0xff]
  %v264 = vld [vmem:[%s4 + $0x10] sm:$0xff]
  %v265 = vld [vmem:[%s4 + $0x18] sm:$0xff]
  %v266 = vld [vmem:[%s4 + $0x20] sm:$0xff]
  %v267 = vld [vmem:[%s4 + $0x28] sm:$0xff]
  %v268 = vld [vmem:[%s4 + $0x30] sm:$0xff]
  %v269 = vld [vmem:[%s4 + $0x38] sm:$0xff]
  %v270 = vld [vmem:[%s4 + $0x40] sm:$0xff]
  %v271 = vld [vmem:[%s4 + $0x48] sm:$0xff]
  %v272 = vld [vmem:[%s4 + $0x50] sm:$0xff]
  %v273 = vld [vmem:[%s4 + $0x58] sm:$0xff]
  %v274 = vld [vmem:[%s4 + $0x60] sm:$0xff]
  %v275 = vld [vmem:[%s4 + $0x68] sm:$0xff]
  %v276 = vld [vmem:[%s4 + $0x70] sm:$0xff]
  %v277 = vld [vmem:[%s4 + $0x78] sm:$0xff]
  %v278 = vld [vmem:[%s4 + $0x80] sm:$0xff]
  %v279 = vld [vmem:[%s4 + $0x88] sm:$0xff]
  %v280 = vld [vmem:[%s4 + $0x90] sm:$0xff]
  %v281 = vld [vmem:[%s4 + $0x98] sm:$0xff]
  %v282 = vld [vmem:[%s4 + $0xa0] sm:$0xff]
  %v283 = vld [vmem:[%s4 + $0xa8] sm:$0xff]
  %v284 = vld [vmem:[%s4 + $0xb0] sm:$0xff]
  %v285 = vld [vmem:[%s4 + $0xb8] sm:$0xff]
  %v286 = vld [vmem:[%s4 + $0xc0] sm:$0xff]
  %v287 = vld [vmem:[%s4 + $0xc8] sm:$0xff]
  %v288 = vld [vmem:[%s4 + $0xd0] sm:$0xff]
  %v289 = vld [vmem:[%s4 + $0xd8] sm:$0xff]
  %v290 = vld [vmem:[%s4 + $0xe0] sm:$0xff]
  %v291 = vld [vmem:[%s4 + $0xe8] sm:$0xff]
  %v292 = vld [vmem:[%s4 + $0xf0] sm:$0xff]
  %v293 = vld [vmem:[%s4 + $0xf8] sm:$0xff]
  %294 = vmatpush.msra.mxu0 %v292
  %295 = vmatpush.msra.mxu0 %v290
  %296 = vmatpush.msra.mxu0 %v288
  %297 = vmatpush.msra.mxu0 %v286
  %298 = vmatpush.msra.mxu0 %v284
  %299 = vmatpush.msra.mxu0 %v282
  %300 = vmatpush.msra.mxu0 %v280
  %301 = vmatpush.msra.mxu0 %v278
  %302 = vmatpush.msra.mxu0 %v276
  %303 = vmatpush.msra.mxu0 %v274
  %304 = vmatpush.msra.mxu0 %v272
  %305 = vmatpush.msra.mxu0 %v270
  %306 = vmatpush.msra.mxu0 %v268
  %307 = vmatpush.msra.mxu0 %v266
  %308 = vmatpush.msra.mxu0 %v264
  %309 = vmatpush.msra.mxu0 %v262
  %310 = vmatmul.f32.gmra.mxu0 %v261
  %v311 = vpop.f32.mrf.mxu0
  %v312 = vadd.f32 0.0, %v311
  %313 = vdwg.mxu0
  %314 = vmatpush.msra.mxu0 %v293
  %315 = vmatpush.msra.mxu0 %v291
  %316 = vmatpush.msra.mxu0 %v289
  %317 = vmatpush.msra.mxu0 %v287
  %318 = vmatpush.msra.mxu0 %v285
  %319 = vmatpush.msra.mxu0 %v283
  %320 = vmatpush.msra.mxu0 %v281
  %321 = vmatpush.msra.mxu0 %v279
  %322 = vmatpush.msra.mxu0 %v277
  %323 = vmatpush.msra.mxu0 %v275
  %324 = vmatpush.msra.mxu0 %v273
  %325 = vmatpush.msra.mxu0 %v271
  %326 = vmatpush.msra.mxu0 %v269
  %327 = vmatpush.msra.mxu0 %v267
  %328 = vmatpush.msra.mxu0 %v265
  %329 = vmatpush.msra.mxu0 %v263
  %330 = vmatmul.f32.gmra.mxu0 %v261
  %v331 = vpop.f32.mrf.mxu0
  %v332 = vadd.f32 0.0, %v331
  %333 = vdwg.mxu0
  %v334 = vld [vmem:[%s5] sm:$0xff]
  %v335 = vld [vmem:[%s5 + $0x8] sm:$0x3]
  %s336 = scalar_lea.vmem %s4, 256
  %v337 = vld [vmem:[%s336] sm:$0xff]
  %v338 = vld [vmem:[%s336 + $0x8] sm:$0xff]
  %v339 = vld [vmem:[%s336 + $0x10] sm:$0xff]
  %v340 = vld [vmem:[%s336 + $0x18] sm:$0xff]
  %v341 = vld [vmem:[%s336 + $0x20] sm:$0xff]
  %v342 = vld [vmem:[%s336 + $0x28] sm:$0xff]
  %v343 = vld [vmem:[%s336 + $0x30] sm:$0xff]
  %v344 = vld [vmem:[%s336 + $0x38] sm:$0xff]
  %v345 = vld [vmem:[%s336 + $0x40] sm:$0xff]
  %v346 = vld [vmem:[%s336 + $0x48] sm:$0xff]
  %v347 = vld [vmem:[%s336 + $0x50] sm:$0xff]
  %v348 = vld [vmem:[%s336 + $0x58] sm:$0xff]
  %v349 = vld [vmem:[%s336 + $0x60] sm:$0xff]
  %v350 = vld [vmem:[%s336 + $0x68] sm:$0xff]
  %v351 = vld [vmem:[%s336 + $0x70] sm:$0xff]
  %v352 = vld [vmem:[%s336 + $0x78] sm:$0xff]
  %v353 = vld [vmem:[%s336 + $0x80] sm:$0xff]
  %v354 = vld [vmem:[%s336 + $0x88] sm:$0xff]
  %v355 = vld [vmem:[%s336 + $0x90] sm:$0xff]
  %v356 = vld [vmem:[%s336 + $0x98] sm:$0xff]
  %v357 = vld [vmem:[%s336 + $0xa0] sm:$0xff]
  %v358 = vld [vmem:[%s336 + $0xa8] sm:$0xff]
  %v359 = vld [vmem:[%s336 + $0xb0] sm:$0xff]
  %v360 = vld [vmem:[%s336 + $0xb8] sm:$0xff]
  %v361 = vld [vmem:[%s336 + $0xc0] sm:$0xff]
  %v362 = vld [vmem:[%s336 + $0xc8] sm:$0xff]
  %v363 = vld [vmem:[%s336 + $0xd0] sm:$0xff]
  %v364 = vld [vmem:[%s336 + $0xd8] sm:$0xff]
  %v365 = vld [vmem:[%s336 + $0xe0] sm:$0xff]
  %v366 = vld [vmem:[%s336 + $0xe8] sm:$0xff]
  %v367 = vld [vmem:[%s336 + $0xf0] sm:$0xff]
  %v368 = vld [vmem:[%s336 + $0xf8] sm:$0xff]
  %369 = vmatpush.msra.mxu0 %v367
  %370 = vmatpush.msra.mxu0 %v365
  %371 = vmatpush.msra.mxu0 %v363
  %372 = vmatpush.msra.mxu0 %v361
  %373 = vmatpush.msra.mxu0 %v359
  %374 = vmatpush.msra.mxu0 %v357
  %375 = vmatpush.msra.mxu0 %v355
  %376 = vmatpush.msra.mxu0 %v353
  %377 = vmatpush.msra.mxu0 %v351
  %378 = vmatpush.msra.mxu0 %v349
  %379 = vmatpush.msra.mxu0 %v347
  %380 = vmatpush.msra.mxu0 %v345
  %381 = vmatpush.msra.mxu0 %v343
  %382 = vmatpush.msra.mxu0 %v341
  %383 = vmatpush.msra.mxu0 %v339
  %384 = vmatpush.msra.mxu0 %v337
  %385 = vmatmul.f32.gmra.mxu0 %v261
  %v386 = vpop.f32.mrf.mxu0
  %v387 = vadd.f32 0.0, %v386
  %388 = vdwg.mxu0
  %389 = vmatpush.msra.mxu0 %v368
  %390 = vmatpush.msra.mxu0 %v366
  %391 = vmatpush.msra.mxu0 %v364
  %392 = vmatpush.msra.mxu0 %v362
  %393 = vmatpush.msra.mxu0 %v360
  %394 = vmatpush.msra.mxu0 %v358
  %395 = vmatpush.msra.mxu0 %v356
  %396 = vmatpush.msra.mxu0 %v354
  %397 = vmatpush.msra.mxu0 %v352
  %398 = vmatpush.msra.mxu0 %v350
  %399 = vmatpush.msra.mxu0 %v348
  %400 = vmatpush.msra.mxu0 %v346
  %401 = vmatpush.msra.mxu0 %v344
  %402 = vmatpush.msra.mxu0 %v342
  %403 = vmatpush.msra.mxu0 %v340
  %404 = vmatpush.msra.mxu0 %v338
  %405 = vmatmul.f32.gmra.mxu0 %v261
  %v406 = vpop.f32.mrf.mxu0
  %v407 = vadd.f32 0.0, %v406
  %408 = vdwg.mxu0
  %s409 = scalar_lea.vmem %s5, 16
  %v410 = vld [vmem:[%s409] sm:$0xff]
  %v411 = vld [vmem:[%s409 + $0x8] sm:$0x3]
  %v413 = vsel %vm59, %v410, 0
  %v416 = vsel %vm59, %v411, 0
  %418 = vmatpush.msra.mxu0 0.0
  %419 = vmatpush.msra.mxu0 0.0
  %420 = vmatpush.msra.mxu0 0.0
  %421 = vmatpush.msra.mxu0 0.0
  %422 = vmatpush.msra.mxu0 0.0
  %423 = vmatpush.msra.mxu0 0.0
  %424 = vmatpush.msra.mxu0 0.0
  %425 = vmatpush.msra.mxu0 0.0
  %426 = vmatpush.msra.mxu0 0.0
  %427 = vmatpush.msra.mxu0 0.0
  %428 = vmatpush.msra.mxu0 0.0
  %429 = vmatpush.msra.mxu0 0.0
  %430 = vmatpush.msra.mxu0 0.0
  %431 = vmatpush.msra.mxu0 0.0
  %432 = vmatpush.msra.mxu0 0.0
  %433 = vmatpush.msra.mxu0 %v387
  %434 = vmatmul.f32.gmra.mxu0 %v413
  %v435 = vpop.f32.mrf.mxu0
  %v436 = vadd.f32 0.0, %v435
  %437 = vmatmul.f32.gmra.mxu0 %v416
  %v438 = vpop.f32.mrf.mxu0
  %v439 = vadd.f32 0.0, %v438
  %440 = vdwg.mxu0
  %441 = vmatpush.msra.mxu0 0.0
  %442 = vmatpush.msra.mxu0 0.0
  %443 = vmatpush.msra.mxu0 0.0
  %444 = vmatpush.msra.mxu0 0.0
  %445 = vmatpush.msra.mxu0 0.0
  %446 = vmatpush.msra.mxu0 0.0
  %447 = vmatpush.msra.mxu0 0.0
  %448 = vmatpush.msra.mxu0 0.0
  %449 = vmatpush.msra.mxu0 0.0
  %450 = vmatpush.msra.mxu0 0.0
  %451 = vmatpush.msra.mxu0 0.0
  %452 = vmatpush.msra.mxu0 0.0
  %453 = vmatpush.msra.mxu0 0.0
  %454 = vmatpush.msra.mxu0 0.0
  %455 = vmatpush.msra.mxu0 0.0
  %456 = vmatpush.msra.mxu0 %v407
  %457 = vmatmul.f32.gmra.mxu0 %v413
  %v458 = vpop.f32.mrf.mxu0
  %v459 = vadd.f32 0.0, %v458
  %460 = vmatmul.f32.gmra.mxu0 %v416
  %v461 = vpop.f32.mrf.mxu0
  %v462 = vadd.f32 0.0, %v461
  %463 = vdwg.mxu0
  %v465 = vsel %vm59, %v334, 0
  %v468 = vsel %vm59, %v335, 0
  %470 = vmatpush.msra.mxu0 0.0
  %471 = vmatpush.msra.mxu0 0.0
  %472 = vmatpush.msra.mxu0 0.0
  %473 = vmatpush.msra.mxu0 0.0
  %474 = vmatpush.msra.mxu0 0.0
  %475 = vmatpush.msra.mxu0 0.0
  %476 = vmatpush.msra.mxu0 0.0
  %477 = vmatpush.msra.mxu0 0.0
  %478 = vmatpush.msra.mxu0 0.0
  %479 = vmatpush.msra.mxu0 0.0
  %480 = vmatpush.msra.mxu0 0.0
  %481 = vmatpush.msra.mxu0 0.0
  %482 = vmatpush.msra.mxu0 0.0
  %483 = vmatpush.msra.mxu0 0.0
  %484 = vmatpush.msra.mxu0 0.0
  %485 = vmatpush.msra.mxu0 %v312
  %486 = vmatmul.f32.gmra.mxu0 %v465
  %v487 = vpop.f32.mrf.mxu0
  %v488 = vadd.f32 %v436, %v487
  %489 = vmatmul.f32.gmra.mxu0 %v468
  %v490 = vpop.f32.mrf.mxu0
  %v491 = vadd.f32 %v439, %v490
  %492 = vdwg.mxu0
  %493 = vmatpush.msra.mxu0 0.0
  %494 = vmatpush.msra.mxu0 0.0
  %495 = vmatpush.msra.mxu0 0.0
  %496 = vmatpush.msra.mxu0 0.0
  %497 = vmatpush.msra.mxu0 0.0
  %498 = vmatpush.msra.mxu0 0.0
  %499 = vmatpush.msra.mxu0 0.0
  %500 = vmatpush.msra.mxu0 0.0
  %501 = vmatpush.msra.mxu0 0.0
  %502 = vmatpush.msra.mxu0 0.0
  %503 = vmatpush.msra.mxu0 0.0
  %504 = vmatpush.msra.mxu0 0.0
  %505 = vmatpush.msra.mxu0 0.0
  %506 = vmatpush.msra.mxu0 0.0
  %507 = vmatpush.msra.mxu0 0.0
  %508 = vmatpush.msra.mxu0 %v332
  %509 = vmatmul.f32.gmra.mxu0 %v465
  %v510 = vpop.f32.mrf.mxu0
  %v511 = vadd.f32 %v459, %v510
  %512 = vmatmul.f32.gmra.mxu0 %v468
  %v513 = vpop.f32.mrf.mxu0
  %v514 = vadd.f32 %v462, %v513
  %515 = vdwg.mxu0
  %s516 = scalar_lea.vmem %s4, 512
  %v517 = vld [vmem:[%s516] sm:$0xff]
  %v518 = vld [vmem:[%s516 + $0x8] sm:$0xff]
  %v519 = vld [vmem:[%s516 + $0x10] sm:$0xff]
  %v520 = vld [vmem:[%s516 + $0x18] sm:$0xff]
  %v521 = vld [vmem:[%s516 + $0x20] sm:$0xff]
  %v522 = vld [vmem:[%s516 + $0x28] sm:$0xff]
  %v523 = vld [vmem:[%s516 + $0x30] sm:$0xff]
  %v524 = vld [vmem:[%s516 + $0x38] sm:$0xff]
  %v525 = vld [vmem:[%s516 + $0x40] sm:$0xff]
  %v526 = vld [vmem:[%s516 + $0x48] sm:$0xff]
  %v527 = vld [vmem:[%s516 + $0x50] sm:$0xff]
  %v528 = vld [vmem:[%s516 + $0x58] sm:$0xff]
  %v529 = vld [vmem:[%s516 + $0x60] sm:$0xff]
  %v530 = vld [vmem:[%s516 + $0x68] sm:$0xff]
  %v531 = vld [vmem:[%s516 + $0x70] sm:$0xff]
  %v532 = vld [vmem:[%s516 + $0x78] sm:$0xff]
  %v533 = vld [vmem:[%s516 + $0x80] sm:$0xff]
  %v534 = vld [vmem:[%s516 + $0x88] sm:$0xff]
  %v535 = vld [vmem:[%s516 + $0x90] sm:$0xff]
  %v536 = vld [vmem:[%s516 + $0x98] sm:$0xff]
  %v537 = vld [vmem:[%s516 + $0xa0] sm:$0xff]
  %v538 = vld [vmem:[%s516 + $0xa8] sm:$0xff]
  %v539 = vld [vmem:[%s516 + $0xb0] sm:$0xff]
  %v540 = vld [vmem:[%s516 + $0xb8] sm:$0xff]
  %v541 = vld [vmem:[%s516 + $0xc0] sm:$0xff]
  %v542 = vld [vmem:[%s516 + $0xc8] sm:$0xff]
  %v543 = vld [vmem:[%s516 + $0xd0] sm:$0xff]
  %v544 = vld [vmem:[%s516 + $0xd8] sm:$0xff]
  %v545 = vld [vmem:[%s516 + $0xe0] sm:$0xff]
  %v546 = vld [vmem:[%s516 + $0xe8] sm:$0xff]
  %v547 = vld [vmem:[%s516 + $0xf0] sm:$0xff]
  %v548 = vld [vmem:[%s516 + $0xf8] sm:$0xff]
  %549 = vmatpush.msra.mxu0 %v547
  %550 = vmatpush.msra.mxu0 %v545
  %551 = vmatpush.msra.mxu0 %v543
  %552 = vmatpush.msra.mxu0 %v541
  %553 = vmatpush.msra.mxu0 %v539
  %554 = vmatpush.msra.mxu0 %v537
  %555 = vmatpush.msra.mxu0 %v535
  %556 = vmatpush.msra.mxu0 %v533
  %557 = vmatpush.msra.mxu0 %v531
  %558 = vmatpush.msra.mxu0 %v529
  %559 = vmatpush.msra.mxu0 %v527
  %560 = vmatpush.msra.mxu0 %v525
  %561 = vmatpush.msra.mxu0 %v523
  %562 = vmatpush.msra.mxu0 %v521
  %563 = vmatpush.msra.mxu0 %v519
  %564 = vmatpush.msra.mxu0 %v517
  %565 = vmatmul.f32.gmra.mxu0 %v261
  %v566 = vpop.f32.mrf.mxu0
  %v567 = vadd.f32 0.0, %v566
  %568 = vdwg.mxu0
  %569 = vmatpush.msra.mxu0 %v548
  %570 = vmatpush.msra.mxu0 %v546
  %571 = vmatpush.msra.mxu0 %v544
  %572 = vmatpush.msra.mxu0 %v542
  %573 = vmatpush.msra.mxu0 %v540
  %574 = vmatpush.msra.mxu0 %v538
  %575 = vmatpush.msra.mxu0 %v536
  %576 = vmatpush.msra.mxu0 %v534
  %577 = vmatpush.msra.mxu0 %v532
  %578 = vmatpush.msra.mxu0 %v530
  %579 = vmatpush.msra.mxu0 %v528
  %580 = vmatpush.msra.mxu0 %v526
  %581 = vmatpush.msra.mxu0 %v524
  %582 = vmatpush.msra.mxu0 %v522
  %583 = vmatpush.msra.mxu0 %v520
  %584 = vmatpush.msra.mxu0 %v518
  %585 = vmatmul.f32.gmra.mxu0 %v261
  %v586 = vpop.f32.mrf.mxu0
  %v587 = vadd.f32 0.0, %v586
  %588 = vdwg.mxu0
  %s589 = scalar_lea.vmem %s5, 32
  %v590 = vld [vmem:[%s589] sm:$0xff]
  %v591 = vld [vmem:[%s589 + $0x8] sm:$0x3]
  %v593 = vsel %vm59, %v590, 0
  %v596 = vsel %vm59, %v591, 0
  %598 = vmatpush.msra.mxu0 0.0
  %599 = vmatpush.msra.mxu0 0.0
  %600 = vmatpush.msra.mxu0 0.0
  %601 = vmatpush.msra.mxu0 0.0
  %602 = vmatpush.msra.mxu0 0.0
  %603 = vmatpush.msra.mxu0 0.0
  %604 = vmatpush.msra.mxu0 0.0
  %605 = vmatpush.msra.mxu0 0.0
  %606 = vmatpush.msra.mxu0 0.0
  %607 = vmatpush.msra.mxu0 0.0
  %608 = vmatpush.msra.mxu0 0.0
  %609 = vmatpush.msra.mxu0 0.0
  %610 = vmatpush.msra.mxu0 0.0
  %611 = vmatpush.msra.mxu0 0.0
  %612 = vmatpush.msra.mxu0 0.0
  %613 = vmatpush.msra.mxu0 %v567
  %614 = vmatmul.f32.gmra.mxu0 %v593
  %v615 = vpop.f32.mrf.mxu0
  %v616 = vadd.f32 0.0, %v615
  %617 = vmatmul.f32.gmra.mxu0 %v596
  %v618 = vpop.f32.mrf.mxu0
  %v619 = vadd.f32 0.0, %v618
  %620 = vdwg.mxu0
  %621 = vmatpush.msra.mxu0 0.0
  %622 = vmatpush.msra.mxu0 0.0
  %623 = vmatpush.msra.mxu0 0.0
  %624 = vmatpush.msra.mxu0 0.0
  %625 = vmatpush.msra.mxu0 0.0
  %626 = vmatpush.msra.mxu0 0.0
  %627 = vmatpush.msra.mxu0 0.0
  %628 = vmatpush.msra.mxu0 0.0
  %629 = vmatpush.msra.mxu0 0.0
  %630 = vmatpush.msra.mxu0 0.0
  %631 = vmatpush.msra.mxu0 0.0
  %632 = vmatpush.msra.mxu0 0.0
  %633 = vmatpush.msra.mxu0 0.0
  %634 = vmatpush.msra.mxu0 0.0
  %635 = vmatpush.msra.mxu0 0.0
  %636 = vmatpush.msra.mxu0 %v587
  %637 = vmatmul.f32.gmra.mxu0 %v593
  %v638 = vpop.f32.mrf.mxu0
  %v639 = vadd.f32 0.0, %v638
  %640 = vmatmul.f32.gmra.mxu0 %v596
  %v641 = vpop.f32.mrf.mxu0
  %v642 = vadd.f32 0.0, %v641
  %643 = vdwg.mxu0
  %v644 = vadd.f32 %v488, %v616
  %v645 = vadd.f32 %v511, %v639
  %v646 = vadd.f32 %v491, %v619
  %v647 = vadd.f32 %v514, %v642
  %s648 = scalar_lea.vmem %s4, 768
  %v649 = vld [vmem:[%s648] sm:$0xff]
  %v650 = vld [vmem:[%s648 + $0x8] sm:$0xff]
  %v651 = vld [vmem:[%s648 + $0x10] sm:$0xff]
  %v652 = vld [vmem:[%s648 + $0x18] sm:$0xff]
  %v653 = vld [vmem:[%s648 + $0x20] sm:$0xff]
  %v654 = vld [vmem:[%s648 + $0x28] sm:$0xff]
  %v655 = vld [vmem:[%s648 + $0x30] sm:$0xff]
  %v656 = vld [vmem:[%s648 + $0x38] sm:$0xff]
  %v657 = vld [vmem:[%s648 + $0x40] sm:$0xff]
  %v658 = vld [vmem:[%s648 + $0x48] sm:$0xff]
  %v659 = vld [vmem:[%s648 + $0x50] sm:$0xff]
  %v660 = vld [vmem:[%s648 + $0x58] sm:$0xff]
  %v661 = vld [vmem:[%s648 + $0x60] sm:$0xff]
  %v662 = vld [vmem:[%s648 + $0x68] sm:$0xff]
  %v663 = vld [vmem:[%s648 + $0x70] sm:$0xff]
  %v664 = vld [vmem:[%s648 + $0x78] sm:$0xff]
  %v665 = vld [vmem:[%s648 + $0x80] sm:$0xff]
  %v666 = vld [vmem:[%s648 + $0x88] sm:$0xff]
  %v667 = vld [vmem:[%s648 + $0x90] sm:$0xff]
  %v668 = vld [vmem:[%s648 + $0x98] sm:$0xff]
  %v669 = vld [vmem:[%s648 + $0xa0] sm:$0xff]
  %v670 = vld [vmem:[%s648 + $0xa8] sm:$0xff]
  %v671 = vld [vmem:[%s648 + $0xb0] sm:$0xff]
  %v672 = vld [vmem:[%s648 + $0xb8] sm:$0xff]
  %v673 = vld [vmem:[%s648 + $0xc0] sm:$0xff]
  %v674 = vld [vmem:[%s648 + $0xc8] sm:$0xff]
  %v675 = vld [vmem:[%s648 + $0xd0] sm:$0xff]
  %v676 = vld [vmem:[%s648 + $0xd8] sm:$0xff]
  %v677 = vld [vmem:[%s648 + $0xe0] sm:$0xff]
  %v678 = vld [vmem:[%s648 + $0xe8] sm:$0xff]
  %v679 = vld [vmem:[%s648 + $0xf0] sm:$0xff]
  %v680 = vld [vmem:[%s648 + $0xf8] sm:$0xff]
  %681 = vmatpush.msra.mxu0 %v679
  %682 = vmatpush.msra.mxu0 %v677
  %683 = vmatpush.msra.mxu0 %v675
  %684 = vmatpush.msra.mxu0 %v673
  %685 = vmatpush.msra.mxu0 %v671
  %686 = vmatpush.msra.mxu0 %v669
  %687 = vmatpush.msra.mxu0 %v667
  %688 = vmatpush.msra.mxu0 %v665
  %689 = vmatpush.msra.mxu0 %v663
  %690 = vmatpush.msra.mxu0 %v661
  %691 = vmatpush.msra.mxu0 %v659
  %692 = vmatpush.msra.mxu0 %v657
  %693 = vmatpush.msra.mxu0 %v655
  %694 = vmatpush.msra.mxu0 %v653
  %695 = vmatpush.msra.mxu0 %v651
  %696 = vmatpush.msra.mxu0 %v649
  %697 = vmatmul.f32.gmra.mxu0 %v261
  %v698 = vpop.f32.mrf.mxu0
  %v699 = vadd.f32 0.0, %v698
  %700 = vdwg.mxu0
  %701 = vmatpush.msra.mxu0 %v680
  %702 = vmatpush.msra.mxu0 %v678
  %703 = vmatpush.msra.mxu0 %v676
  %704 = vmatpush.msra.mxu0 %v674
  %705 = vmatpush.msra.mxu0 %v672
  %706 = vmatpush.msra.mxu0 %v670
  %707 = vmatpush.msra.mxu0 %v668
  %708 = vmatpush.msra.mxu0 %v666
  %709 = vmatpush.msra.mxu0 %v664
  %710 = vmatpush.msra.mxu0 %v662
  %711 = vmatpush.msra.mxu0 %v660
  %712 = vmatpush.msra.mxu0 %v658
  %713 = vmatpush.msra.mxu0 %v656
  %714 = vmatpush.msra.mxu0 %v654
  %715 = vmatpush.msra.mxu0 %v652
  %716 = vmatpush.msra.mxu0 %v650
  %717 = vmatmul.f32.gmra.mxu0 %v261
  %v718 = vpop.f32.mrf.mxu0
  %v719 = vadd.f32 0.0, %v718
  %720 = vdwg.mxu0
  %s721 = scalar_lea.vmem %s5, 48
  %v722 = vld [vmem:[%s721] sm:$0xff]
  %v723 = vld [vmem:[%s721 + $0x8] sm:$0x3]
  %v725 = vsel %vm59, %v722, 0
  %v728 = vsel %vm59, %v723, 0
  %730 = vmatpush.msra.mxu0 0.0
  %731 = vmatpush.msra.mxu0 0.0
  %732 = vmatpush.msra.mxu0 0.0
  %733 = vmatpush.msra.mxu0 0.0
  %734 = vmatpush.msra.mxu0 0.0
  %735 = vmatpush.msra.mxu0 0.0
  %736 = vmatpush.msra.mxu0 0.0
  %737 = vmatpush.msra.mxu0 0.0
  %738 = vmatpush.msra.mxu0 0.0
  %739 = vmatpush.msra.mxu0 0.0
  %740 = vmatpush.msra.mxu0 0.0
  %741 = vmatpush.msra.mxu0 0.0
  %742 = vmatpush.msra.mxu0 0.0
  %743 = vmatpush.msra.mxu0 0.0
  %744 = vmatpush.msra.mxu0 0.0
  %745 = vmatpush.msra.mxu0 %v699
  %746 = vmatmul.f32.gmra.mxu0 %v725
  %v747 = vpop.f32.mrf.mxu0
  %v748 = vadd.f32 0.0, %v747
  %749 = vmatmul.f32.gmra.mxu0 %v728
  %v750 = vpop.f32.mrf.mxu0
  %v751 = vadd.f32 0.0, %v750
  %752 = vdwg.mxu0
  %753 = vmatpush.msra.mxu0 0.0
  %754 = vmatpush.msra.mxu0 0.0
  %755 = vmatpush.msra.mxu0 0.0
  %756 = vmatpush.msra.mxu0 0.0
  %757 = vmatpush.msra.mxu0 0.0
  %758 = vmatpush.msra.mxu0 0.0
  %759 = vmatpush.msra.mxu0 0.0
  %760 = vmatpush.msra.mxu0 0.0
  %761 = vmatpush.msra.mxu0 0.0
  %762 = vmatpush.msra.mxu0 0.0
  %763 = vmatpush.msra.mxu0 0.0
  %764 = vmatpush.msra.mxu0 0.0
  %765 = vmatpush.msra.mxu0 0.0
  %766 = vmatpush.msra.mxu0 0.0
  %767 = vmatpush.msra.mxu0 0.0
  %768 = vmatpush.msra.mxu0 %v719
  %769 = vmatmul.f32.gmra.mxu0 %v725
  %v770 = vpop.f32.mrf.mxu0
  %v771 = vadd.f32 0.0, %v770
  %772 = vmatmul.f32.gmra.mxu0 %v728
  %v773 = vpop.f32.mrf.mxu0
  %v774 = vadd.f32 0.0, %v773
  %775 = vdwg.mxu0
  %v776 = vadd.f32 %v644, %v748
  %v777 = vadd.f32 %v645, %v771
  %v778 = vadd.f32 %v646, %v751
  %v779 = vadd.f32 %v647, %v774
  %v780 = vld [vmem:[%s6] sm:$0x3]
  %v782 = vperm.slane %v780, 0
  %v783 = vperm.slane %v780, 1
  %v786 = vadd.f32 %v776, %v782
  %v787 = vadd.f32 %v777, %v783
  %v788 = vadd.f32 %v778, %v782
  %v789 = vadd.f32 %v779, %v783
  %v790 = vmax.f32 %v786, 0.0
  %v791 = vmax.f32 %v787, 0.0
  %v792 = vmax.f32 %v788, 0.0
  %v793 = vmax.f32 %v789, 0.0
  %v794 = vld [vmem:[%s7] sm:$0xff]
  %v795 = vld [vmem:[%s7 + $0x8] sm:$0xff]
  %v796 = vld [vmem:[%s7 + $0x10] sm:$0xff]
  %v797 = vld [vmem:[%s7 + $0x18] sm:$0xff]
  %v798 = vld [vmem:[%s7 + $0x20] sm:$0xff]
  %v799 = vld [vmem:[%s7 + $0x28] sm:$0xff]
  %v800 = vld [vmem:[%s7 + $0x30] sm:$0xff]
  %v801 = vld [vmem:[%s7 + $0x38] sm:$0xff]
  %v802 = vld [vmem:[%s7 + $0x40] sm:$0xff]
  %v803 = vld [vmem:[%s7 + $0x48] sm:$0xff]
  %v804 = vld [vmem:[%s7 + $0x50] sm:$0xff]
  %v805 = vld [vmem:[%s7 + $0x58] sm:$0xff]
  %v806 = vld [vmem:[%s7 + $0x60] sm:$0xff]
  %v807 = vld [vmem:[%s7 + $0x68] sm:$0xff]
  %v808 = vld [vmem:[%s7 + $0x70] sm:$0xff]
  %v809 = vld [vmem:[%s7 + $0x78] sm:$0xff]
  %v810 = vld [vmem:[%s7 + $0x80] sm:$0xff]
  %v811 = vld [vmem:[%s7 + $0x88] sm:$0xff]
  %v812 = vld [vmem:[%s7 + $0x90] sm:$0xff]
  %v813 = vld [vmem:[%s7 + $0x98] sm:$0xff]
  %v814 = vld [vmem:[%s7 + $0xa0] sm:$0xff]
  %v815 = vld [vmem:[%s7 + $0xa8] sm:$0xff]
  %v816 = vld [vmem:[%s7 + $0xb0] sm:$0xff]
  %v817 = vld [vmem:[%s7 + $0xb8] sm:$0xff]
  %v818 = vld [vmem:[%s7 + $0xc0] sm:$0xff]
  %v819 = vld [vmem:[%s7 + $0xc8] sm:$0xff]
  %v820 = vld [vmem:[%s7 + $0xd0] sm:$0xff]
  %v821 = vld [vmem:[%s7 + $0xd8] sm:$0xff]
  %v822 = vld [vmem:[%s7 + $0xe0] sm:$0xff]
  %v823 = vld [vmem:[%s7 + $0xe8] sm:$0xff]
  %v824 = vld [vmem:[%s7 + $0xf0] sm:$0xff]
  %v825 = vld [vmem:[%s7 + $0xf8] sm:$0xff]
  %v826 = vld [vmem:[%s7 + $0x100] sm:$0xff]
  %v827 = vld [vmem:[%s7 + $0x108] sm:$0xff]
  %v828 = vld [vmem:[%s7 + $0x110] sm:$0xff]
  %v829 = vld [vmem:[%s7 + $0x118] sm:$0xff]
  %v830 = vld [vmem:[%s7 + $0x120] sm:$0xff]
  %v831 = vld [vmem:[%s7 + $0x128] sm:$0xff]
  %v832 = vld [vmem:[%s7 + $0x130] sm:$0xff]
  %v833 = vld [vmem:[%s7 + $0x138] sm:$0xff]
  %vm834 = vcmask 261120
  %v836 = vsel %vm834, %v791, 0
  %v839 = vsel %vm834, %v793, 0
  %841 = vmatpush.msra.mxu0 %v824
  %842 = vmatpush.msra.mxu0 %v822
  %843 = vmatpush.msra.mxu0 %v820
  %844 = vmatpush.msra.mxu0 %v818
  %845 = vmatpush.msra.mxu0 %v816
  %846 = vmatpush.msra.mxu0 %v814
  %847 = vmatpush.msra.mxu0 %v812
  %848 = vmatpush.msra.mxu0 %v810
  %849 = vmatpush.msra.mxu0 %v808
  %850 = vmatpush.msra.mxu0 %v806
  %851 = vmatpush.msra.mxu0 %v804
  %852 = vmatpush.msra.mxu0 %v802
  %853 = vmatpush.msra.mxu0 %v800
  %854 = vmatpush.msra.mxu0 %v798
  %855 = vmatpush.msra.mxu0 %v796
  %856 = vmatpush.msra.mxu0 %v794
  %857 = vmatmul.f32.gmra.mxu0 %v790
  %v858 = vpop.f32.mrf.mxu0
  %v859 = vadd.f32 0.0, %v858
  %860 = vmatmul.f32.gmra.mxu0 %v792
  %v861 = vpop.f32.mrf.mxu0
  %v862 = vadd.f32 0.0, %v861
  %863 = vdwg.mxu0
  %864 = vmatpush.msra.mxu0 0.0
  %865 = vmatpush.msra.mxu0 0.0
  %866 = vmatpush.msra.mxu0 0.0
  %867 = vmatpush.msra.mxu0 0.0
  %868 = vmatpush.msra.mxu0 0.0
  %869 = vmatpush.msra.mxu0 0.0
  %870 = vmatpush.msra.mxu0 0.0
  %871 = vmatpush.msra.mxu0 0.0
  %872 = vmatpush.msra.mxu0 0.0
  %873 = vmatpush.msra.mxu0 0.0
  %874 = vmatpush.msra.mxu0 0.0
  %875 = vmatpush.msra.mxu0 0.0
  %876 = vmatpush.msra.mxu0 %v832
  %877 = vmatpush.msra.mxu0 %v830
  %878 = vmatpush.msra.mxu0 %v828
  %879 = vmatpush.msra.mxu0 %v826
  %880 = vmatmul.f32.gmra.mxu0 %v836
  %v881 = vpop.f32.mrf.mxu0
  %v882 = vadd.f32 %v859, %v881
  %883 = vmatmul.f32.gmra.mxu0 %v839
  %v884 = vpop.f32.mrf.mxu0
  %v885 = vadd.f32 %v862, %v884
  %886 = vdwg.mxu0
  %887 = vmatpush.msra.mxu0 %v825
  %888 = vmatpush.msra.mxu0 %v823
  %889 = vmatpush.msra.mxu0 %v821
  %890 = vmatpush.msra.mxu0 %v819
  %891 = vmatpush.msra.mxu0 %v817
  %892 = vmatpush.msra.mxu0 %v815
  %893 = vmatpush.msra.mxu0 %v813
  %894 = vmatpush.msra.mxu0 %v811
  %895 = vmatpush.msra.mxu0 %v809
  %896 = vmatpush.msra.mxu0 %v807
  %897 = vmatpush.msra.mxu0 %v805
  %898 = vmatpush.msra.mxu0 %v803
  %899 = vmatpush.msra.mxu0 %v801
  %900 = vmatpush.msra.mxu0 %v799
  %901 = vmatpush.msra.mxu0 %v797
  %902 = vmatpush.msra.mxu0 %v795
  %903 = vmatmul.f32.gmra.mxu0 %v790
  %v904 = vpop.f32.mrf.mxu0
  %v905 = vadd.f32 0.0, %v904
  %906 = vmatmul.f32.gmra.mxu0 %v792
  %v907 = vpop.f32.mrf.mxu0
  %v908 = vadd.f32 0.0, %v907
  %909 = vdwg.mxu0
  %910 = vmatpush.msra.mxu0 0.0
  %911 = vmatpush.msra.mxu0 0.0
  %912 = vmatpush.msra.mxu0 0.0
  %913 = vmatpush.msra.mxu0 0.0
  %914 = vmatpush.msra.mxu0 0.0
  %915 = vmatpush.msra.mxu0 0.0
  %916 = vmatpush.msra.mxu0 0.0
  %917 = vmatpush.msra.mxu0 0.0
  %918 = vmatpush.msra.mxu0 0.0
  %919 = vmatpush.msra.mxu0 0.0
  %920 = vmatpush.msra.mxu0 0.0
  %921 = vmatpush.msra.mxu0 0.0
  %922 = vmatpush.msra.mxu0 %v833
  %923 = vmatpush.msra.mxu0 %v831
  %924 = vmatpush.msra.mxu0 %v829
  %925 = vmatpush.msra.mxu0 %v827
  %926 = vmatmul.f32.gmra.mxu0 %v836
  %v927 = vpop.f32.mrf.mxu0
  %v928 = vadd.f32 %v905, %v927
  %929 = vmatmul.f32.gmra.mxu0 %v839
  %v930 = vpop.f32.mrf.mxu0
  %v931 = vadd.f32 %v908, %v930
  %932 = vdwg.mxu0
  %v933 = vld [vmem:[%s8] sm:$0xff]
  %v934 = vld [vmem:[%s8 + $0x8] sm:$0xff]
  %s935 = scalar_lea.vmem %s7, 320
  %v936 = vld [vmem:[%s935] sm:$0xff]
  %v937 = vld [vmem:[%s935 + $0x8] sm:$0xff]
  %v938 = vld [vmem:[%s935 + $0x10] sm:$0xff]
  %v939 = vld [vmem:[%s935 + $0x18] sm:$0xff]
  %v940 = vld [vmem:[%s935 + $0x20] sm:$0xff]
  %v941 = vld [vmem:[%s935 + $0x28] sm:$0xff]
  %v942 = vld [vmem:[%s935 + $0x30] sm:$0xff]
  %v943 = vld [vmem:[%s935 + $0x38] sm:$0xff]
  %v944 = vld [vmem:[%s935 + $0x40] sm:$0xff]
  %v945 = vld [vmem:[%s935 + $0x48] sm:$0xff]
  %v946 = vld [vmem:[%s935 + $0x50] sm:$0xff]
  %v947 = vld [vmem:[%s935 + $0x58] sm:$0xff]
  %v948 = vld [vmem:[%s935 + $0x60] sm:$0xff]
  %v949 = vld [vmem:[%s935 + $0x68] sm:$0xff]
  %v950 = vld [vmem:[%s935 + $0x70] sm:$0xff]
  %v951 = vld [vmem:[%s935 + $0x78] sm:$0xff]
  %v952 = vld [vmem:[%s935 + $0x80] sm:$0xff]
  %v953 = vld [vmem:[%s935 + $0x88] sm:$0xff]
  %v954 = vld [vmem:[%s935 + $0x90] sm:$0xff]
  %v955 = vld [vmem:[%s935 + $0x98] sm:$0xff]
  %v956 = vld [vmem:[%s935 + $0xa0] sm:$0xff]
  %v957 = vld [vmem:[%s935 + $0xa8] sm:$0xff]
  %v958 = vld [vmem:[%s935 + $0xb0] sm:$0xff]
  %v959 = vld [vmem:[%s935 + $0xb8] sm:$0xff]
  %v960 = vld [vmem:[%s935 + $0xc0] sm:$0xff]
  %v961 = vld [vmem:[%s935 + $0xc8] sm:$0xff]
  %v962 = vld [vmem:[%s935 + $0xd0] sm:$0xff]
  %v963 = vld [vmem:[%s935 + $0xd8] sm:$0xff]
  %v964 = vld [vmem:[%s935 + $0xe0] sm:$0xff]
  %v965 = vld [vmem:[%s935 + $0xe8] sm:$0xff]
  %v966 = vld [vmem:[%s935 + $0xf0] sm:$0xff]
  %v967 = vld [vmem:[%s935 + $0xf8] sm:$0xff]
  %v968 = vld [vmem:[%s935 + $0x100] sm:$0xff]
  %v969 = vld [vmem:[%s935 + $0x108] sm:$0xff]
  %v970 = vld [vmem:[%s935 + $0x110] sm:$0xff]
  %v971 = vld [vmem:[%s935 + $0x118] sm:$0xff]
  %v972 = vld [vmem:[%s935 + $0x120] sm:$0xff]
  %v973 = vld [vmem:[%s935 + $0x128] sm:$0xff]
  %v974 = vld [vmem:[%s935 + $0x130] sm:$0xff]
  %v975 = vld [vmem:[%s935 + $0x138] sm:$0xff]
  %976 = vmatpush.msra.mxu0 %v966
  %977 = vmatpush.msra.mxu0 %v964
  %978 = vmatpush.msra.mxu0 %v962
  %979 = vmatpush.msra.mxu0 %v960
  %980 = vmatpush.msra.mxu0 %v958
  %981 = vmatpush.msra.mxu0 %v956
  %982 = vmatpush.msra.mxu0 %v954
  %983 = vmatpush.msra.mxu0 %v952
  %984 = vmatpush.msra.mxu0 %v950
  %985 = vmatpush.msra.mxu0 %v948
  %986 = vmatpush.msra.mxu0 %v946
  %987 = vmatpush.msra.mxu0 %v944
  %988 = vmatpush.msra.mxu0 %v942
  %989 = vmatpush.msra.mxu0 %v940
  %990 = vmatpush.msra.mxu0 %v938
  %991 = vmatpush.msra.mxu0 %v936
  %992 = vmatmul.f32.gmra.mxu0 %v790
  %v993 = vpop.f32.mrf.mxu0
  %v994 = vadd.f32 0.0, %v993
  %995 = vmatmul.f32.gmra.mxu0 %v792
  %v996 = vpop.f32.mrf.mxu0
  %v997 = vadd.f32 0.0, %v996
  %998 = vdwg.mxu0
  %999 = vmatpush.msra.mxu0 0.0
  %1000 = vmatpush.msra.mxu0 0.0
  %1001 = vmatpush.msra.mxu0 0.0
  %1002 = vmatpush.msra.mxu0 0.0
  %1003 = vmatpush.msra.mxu0 0.0
  %1004 = vmatpush.msra.mxu0 0.0
  %1005 = vmatpush.msra.mxu0 0.0
  %1006 = vmatpush.msra.mxu0 0.0
  %1007 = vmatpush.msra.mxu0 0.0
  %1008 = vmatpush.msra.mxu0 0.0
  %1009 = vmatpush.msra.mxu0 0.0
  %1010 = vmatpush.msra.mxu0 0.0
  %1011 = vmatpush.msra.mxu0 %v974
  %1012 = vmatpush.msra.mxu0 %v972
  %1013 = vmatpush.msra.mxu0 %v970
  %1014 = vmatpush.msra.mxu0 %v968
  %1015 = vmatmul.f32.gmra.mxu0 %v836
  %v1016 = vpop.f32.mrf.mxu0
  %v1017 = vadd.f32 %v994, %v1016
  %1018 = vmatmul.f32.gmra.mxu0 %v839
  %v1019 = vpop.f32.mrf.mxu0
  %v1020 = vadd.f32 %v997, %v1019
  %1021 = vdwg.mxu0
  %1022 = vmatpush.msra.mxu0 %v967
  %1023 = vmatpush.msra.mxu0 %v965
  %1024 = vmatpush.msra.mxu0 %v963
  %1025 = vmatpush.msra.mxu0 %v961
  %1026 = vmatpush.msra.mxu0 %v959
  %1027 = vmatpush.msra.mxu0 %v957
  %1028 = vmatpush.msra.mxu0 %v955
  %1029 = vmatpush.msra.mxu0 %v953
  %1030 = vmatpush.msra.mxu0 %v951
  %1031 = vmatpush.msra.mxu0 %v949
  %1032 = vmatpush.msra.mxu0 %v947
  %1033 = vmatpush.msra.mxu0 %v945
  %1034 = vmatpush.msra.mxu0 %v943
  %1035 = vmatpush.msra.mxu0 %v941
  %1036 = vmatpush.msra.mxu0 %v939
  %1037 = vmatpush.msra.mxu0 %v937
  %1038 = vmatmul.f32.gmra.mxu0 %v790
  %v1039 = vpop.f32.mrf.mxu0
  %v1040 = vadd.f32 0.0, %v1039
  %1041 = vmatmul.f32.gmra.mxu0 %v792
  %v1042 = vpop.f32.mrf.mxu0
  %v1043 = vadd.f32 0.0, %v1042
  %1044 = vdwg.mxu0
  %1045 = vmatpush.msra.mxu0 0.0
  %1046 = vmatpush.msra.mxu0 0.0
  %1047 = vmatpush.msra.mxu0 0.0
  %1048 = vmatpush.msra.mxu0 0.0
  %1049 = vmatpush.msra.mxu0 0.0
  %1050 = vmatpush.msra.mxu0 0.0
  %1051 = vmatpush.msra.mxu0 0.0
  %1052 = vmatpush.msra.mxu0 0.0
  %1053 = vmatpush.msra.mxu0 0.0
  %1054 = vmatpush.msra.mxu0 0.0
  %1055 = vmatpush.msra.mxu0 0.0
  %1056 = vmatpush.msra.mxu0 0.0
  %1057 = vmatpush.msra.mxu0 %v975
  %1058 = vmatpush.msra.mxu0 %v973
  %1059 = vmatpush.msra.mxu0 %v971
  %1060 = vmatpush.msra.mxu0 %v969
  %1061 = vmatmul.f32.gmra.mxu0 %v836
  %v1062 = vpop.f32.mrf.mxu0
  %v1063 = vadd.f32 %v1040, %v1062
  %1064 = vmatmul.f32.gmra.mxu0 %v839
  %v1065 = vpop.f32.mrf.mxu0
  %v1066 = vadd.f32 %v1043, %v1065
  %1067 = vdwg.mxu0
  %s1068 = scalar_lea.vmem %s8, 16
  %v1069 = vld [vmem:[%s1068] sm:$0xff]
  %v1070 = vld [vmem:[%s1068 + $0x8] sm:$0xff]
  %vm1071 = vcmask 80896
  %v1073 = vsel %vm1071, %v1069, 0
  %v1076 = vsel %vm1071, %v1070, 0
  %v1079 = vsel %vm154, %v1020, 0
  %v1082 = vsel %vm154, %v1066, 0
  %1084 = vmatpush.msra.mxu0 0.0
  %1085 = vmatpush.msra.mxu0 0.0
  %1086 = vmatpush.msra.mxu0 0.0
  %1087 = vmatpush.msra.mxu0 0.0
  %1088 = vmatpush.msra.mxu0 0.0
  %1089 = vmatpush.msra.mxu0 0.0
  %1090 = vmatpush.msra.mxu0 0.0
  %1091 = vmatpush.msra.mxu0 0.0
  %1092 = vmatpush.msra.mxu0 0.0
  %1093 = vmatpush.msra.mxu0 0.0
  %1094 = vmatpush.msra.mxu0 0.0
  %1095 = vmatpush.msra.mxu0 0.0
  %1096 = vmatpush.msra.mxu0 0.0
  %1097 = vmatpush.msra.mxu0 0.0
  %1098 = vmatpush.msra.mxu0 %v1079
  %1099 = vmatpush.msra.mxu0 %v1017
  %1100 = vmatmul.f32.gmra.mxu0 %v1073
  %v1101 = vpop.f32.mrf.mxu0
  %v1102 = vadd.f32 0.0, %v1101
  %1103 = vmatmul.f32.gmra.mxu0 %v1076
  %v1104 = vpop.f32.mrf.mxu0
  %v1105 = vadd.f32 0.0, %v1104
  %1106 = vdwg.mxu0
  %1107 = vmatpush.msra.mxu0 0.0
  %1108 = vmatpush.msra.mxu0 0.0
  %1109 = vmatpush.msra.mxu0 0.0
  %1110 = vmatpush.msra.mxu0 0.0
  %1111 = vmatpush.msra.mxu0 0.0
  %1112 = vmatpush.msra.mxu0 0.0
  %1113 = vmatpush.msra.mxu0 0.0
  %1114 = vmatpush.msra.mxu0 0.0
  %1115 = vmatpush.msra.mxu0 0.0
  %1116 = vmatpush.msra.mxu0 0.0
  %1117 = vmatpush.msra.mxu0 0.0
  %1118 = vmatpush.msra.mxu0 0.0
  %1119 = vmatpush.msra.mxu0 0.0
  %1120 = vmatpush.msra.mxu0 0.0
  %1121 = vmatpush.msra.mxu0 %v1082
  %1122 = vmatpush.msra.mxu0 %v1063
  %1123 = vmatmul.f32.gmra.mxu0 %v1073
  %v1124 = vpop.f32.mrf.mxu0
  %v1125 = vadd.f32 0.0, %v1124
  %1126 = vmatmul.f32.gmra.mxu0 %v1076
  %v1127 = vpop.f32.mrf.mxu0
  %v1128 = vadd.f32 0.0, %v1127
  %1129 = vdwg.mxu0
  %v1131 = vsel %vm1071, %v933, 0
  %v1134 = vsel %vm1071, %v934, 0
  %v1137 = vsel %vm154, %v885, 0
  %v1140 = vsel %vm154, %v931, 0
  %1142 = vmatpush.msra.mxu0 0.0
  %1143 = vmatpush.msra.mxu0 0.0
  %1144 = vmatpush.msra.mxu0 0.0
  %1145 = vmatpush.msra.mxu0 0.0
  %1146 = vmatpush.msra.mxu0 0.0
  %1147 = vmatpush.msra.mxu0 0.0
  %1148 = vmatpush.msra.mxu0 0.0
  %1149 = vmatpush.msra.mxu0 0.0
  %1150 = vmatpush.msra.mxu0 0.0
  %1151 = vmatpush.msra.mxu0 0.0
  %1152 = vmatpush.msra.mxu0 0.0
  %1153 = vmatpush.msra.mxu0 0.0
  %1154 = vmatpush.msra.mxu0 0.0
  %1155 = vmatpush.msra.mxu0 0.0
  %1156 = vmatpush.msra.mxu0 %v1137
  %1157 = vmatpush.msra.mxu0 %v882
  %1158 = vmatmul.f32.gmra.mxu0 %v1131
  %v1159 = vpop.f32.mrf.mxu0
  %v1160 = vadd.f32 %v1102, %v1159
  %1161 = vmatmul.f32.gmra.mxu0 %v1134
  %v1162 = vpop.f32.mrf.mxu0
  %v1163 = vadd.f32 %v1105, %v1162
  %1164 = vdwg.mxu0
  %1165 = vmatpush.msra.mxu0 0.0
  %1166 = vmatpush.msra.mxu0 0.0
  %1167 = vmatpush.msra.mxu0 0.0
  %1168 = vmatpush.msra.mxu0 0.0
  %1169 = vmatpush.msra.mxu0 0.0
  %1170 = vmatpush.msra.mxu0 0.0
  %1171 = vmatpush.msra.mxu0 0.0
  %1172 = vmatpush.msra.mxu0 0.0
  %1173 = vmatpush.msra.mxu0 0.0
  %1174 = vmatpush.msra.mxu0 0.0
  %1175 = vmatpush.msra.mxu0 0.0
  %1176 = vmatpush.msra.mxu0 0.0
  %1177 = vmatpush.msra.mxu0 0.0
  %1178 = vmatpush.msra.mxu0 0.0
  %1179 = vmatpush.msra.mxu0 %v1140
  %1180 = vmatpush.msra.mxu0 %v928
  %1181 = vmatmul.f32.gmra.mxu0 %v1131
  %v1182 = vpop.f32.mrf.mxu0
  %v1183 = vadd.f32 %v1125, %v1182
  %1184 = vmatmul.f32.gmra.mxu0 %v1134
  %v1185 = vpop.f32.mrf.mxu0
  %v1186 = vadd.f32 %v1128, %v1185
  %1187 = vdwg.mxu0
  %s1188 = scalar_lea.vmem %s7, 640
  %v1189 = vld [vmem:[%s1188] sm:$0xff]
  %v1190 = vld [vmem:[%s1188 + $0x8] sm:$0xff]
  %v1191 = vld [vmem:[%s1188 + $0x10] sm:$0xff]
  %v1192 = vld [vmem:[%s1188 + $0x18] sm:$0xff]
  %v1193 = vld [vmem:[%s1188 + $0x20] sm:$0xff]
  %v1194 = vld [vmem:[%s1188 + $0x28] sm:$0xff]
  %v1195 = vld [vmem:[%s1188 + $0x30] sm:$0xff]
  %v1196 = vld [vmem:[%s1188 + $0x38] sm:$0xff]
  %v1197 = vld [vmem:[%s1188 + $0x40] sm:$0xff]
  %v1198 = vld [vmem:[%s1188 + $0x48] sm:$0xff]
  %v1199 = vld [vmem:[%s1188 + $0x50] sm:$0xff]
  %v1200 = vld [vmem:[%s1188 + $0x58] sm:$0xff]
  %v1201 = vld [vmem:[%s1188 + $0x60] sm:$0xff]
  %v1202 = vld [vmem:[%s1188 + $0x68] sm:$0xff]
  %v1203 = vld [vmem:[%s1188 + $0x70] sm:$0xff]
  %v1204 = vld [vmem:[%s1188 + $0x78] sm:$0xff]
  %v1205 = vld [vmem:[%s1188 + $0x80] sm:$0xff]
  %v1206 = vld [vmem:[%s1188 + $0x88] sm:$0xff]
  %v1207 = vld [vmem:[%s1188 + $0x90] sm:$0xff]
  %v1208 = vld [vmem:[%s1188 + $0x98] sm:$0xff]
  %v1209 = vld [vmem:[%s1188 + $0xa0] sm:$0xff]
  %v1210 = vld [vmem:[%s1188 + $0xa8] sm:$0xff]
  %v1211 = vld [vmem:[%s1188 + $0xb0] sm:$0xff]
  %v1212 = vld [vmem:[%s1188 + $0xb8] sm:$0xff]
  %v1213 = vld [vmem:[%s1188 + $0xc0] sm:$0xff]
  %v1214 = vld [vmem:[%s1188 + $0xc8] sm:$0xff]
  %v1215 = vld [vmem:[%s1188 + $0xd0] sm:$0xff]
  %v1216 = vld [vmem:[%s1188 + $0xd8] sm:$0xff]
  %v1217 = vld [vmem:[%s1188 + $0xe0] sm:$0xff]
  %v1218 = vld [vmem:[%s1188 + $0xe8] sm:$0xff]
  %v1219 = vld [vmem:[%s1188 + $0xf0] sm:$0xff]
  %v1220 = vld [vmem:[%s1188 + $0xf8] sm:$0xff]
  %v1221 = vld [vmem:[%s1188 + $0x100] sm:$0xff]
  %v1222 = vld [vmem:[%s1188 + $0x108] sm:$0xff]
  %v1223 = vld [vmem:[%s1188 + $0x110] sm:$0xff]
  %v1224 = vld [vmem:[%s1188 + $0x118] sm:$0xff]
  %v1225 = vld [vmem:[%s1188 + $0x120] sm:$0xff]
  %v1226 = vld [vmem:[%s1188 + $0x128] sm:$0xff]
  %v1227 = vld [vmem:[%s1188 + $0x130] sm:$0xff]
  %v1228 = vld [vmem:[%s1188 + $0x138] sm:$0xff]
  %1229 = vmatpush.msra.mxu0 %v1219
  %1230 = vmatpush.msra.mxu0 %v1217
  %1231 = vmatpush.msra.mxu0 %v1215
  %1232 = vmatpush.msra.mxu0 %v1213
  %1233 = vmatpush.msra.mxu0 %v1211
  %1234 = vmatpush.msra.mxu0 %v1209
  %1235 = vmatpush.msra.mxu0 %v1207
  %1236 = vmatpush.msra.mxu0 %v1205
  %1237 = vmatpush.msra.mxu0 %v1203
  %1238 = vmatpush.msra.mxu0 %v1201
  %1239 = vmatpush.msra.mxu0 %v1199
  %1240 = vmatpush.msra.mxu0 %v1197
  %1241 = vmatpush.msra.mxu0 %v1195
  %1242 = vmatpush.msra.mxu0 %v1193
  %1243 = vmatpush.msra.mxu0 %v1191
  %1244 = vmatpush.msra.mxu0 %v1189
  %1245 = vmatmul.f32.gmra.mxu0 %v790
  %v1246 = vpop.f32.mrf.mxu0
  %v1247 = vadd.f32 0.0, %v1246
  %1248 = vmatmul.f32.gmra.mxu0 %v792
  %v1249 = vpop.f32.mrf.mxu0
  %v1250 = vadd.f32 0.0, %v1249
  %1251 = vdwg.mxu0
  %1252 = vmatpush.msra.mxu0 0.0
  %1253 = vmatpush.msra.mxu0 0.0
  %1254 = vmatpush.msra.mxu0 0.0
  %1255 = vmatpush.msra.mxu0 0.0
  %1256 = vmatpush.msra.mxu0 0.0
  %1257 = vmatpush.msra.mxu0 0.0
  %1258 = vmatpush.msra.mxu0 0.0
  %1259 = vmatpush.msra.mxu0 0.0
  %1260 = vmatpush.msra.mxu0 0.0
  %1261 = vmatpush.msra.mxu0 0.0
  %1262 = vmatpush.msra.mxu0 0.0
  %1263 = vmatpush.msra.mxu0 0.0
  %1264 = vmatpush.msra.mxu0 %v1227
  %1265 = vmatpush.msra.mxu0 %v1225
  %1266 = vmatpush.msra.mxu0 %v1223
  %1267 = vmatpush.msra.mxu0 %v1221
  %1268 = vmatmul.f32.gmra.mxu0 %v836
  %v1269 = vpop.f32.mrf.mxu0
  %v1270 = vadd.f32 %v1247, %v1269
  %1271 = vmatmul.f32.gmra.mxu0 %v839
  %v1272 = vpop.f32.mrf.mxu0
  %v1273 = vadd.f32 %v1250, %v1272
  %1274 = vdwg.mxu0
  %1275 = vmatpush.msra.mxu0 %v1220
  %1276 = vmatpush.msra.mxu0 %v1218
  %1277 = vmatpush.msra.mxu0 %v1216
  %1278 = vmatpush.msra.mxu0 %v1214
  %1279 = vmatpush.msra.mxu0 %v1212
  %1280 = vmatpush.msra.mxu0 %v1210
  %1281 = vmatpush.msra.mxu0 %v1208
  %1282 = vmatpush.msra.mxu0 %v1206
  %1283 = vmatpush.msra.mxu0 %v1204
  %1284 = vmatpush.msra.mxu0 %v1202
  %1285 = vmatpush.msra.mxu0 %v1200
  %1286 = vmatpush.msra.mxu0 %v1198
  %1287 = vmatpush.msra.mxu0 %v1196
  %1288 = vmatpush.msra.mxu0 %v1194
  %1289 = vmatpush.msra.mxu0 %v1192
  %1290 = vmatpush.msra.mxu0 %v1190
  %1291 = vmatmul.f32.gmra.mxu0 %v790
  %v1292 = vpop.f32.mrf.mxu0
  %v1293 = vadd.f32 0.0, %v1292
  %1294 = vmatmul.f32.gmra.mxu0 %v792
  %v1295 = vpop.f32.mrf.mxu0
  %v1296 = vadd.f32 0.0, %v1295
  %1297 = vdwg.mxu0
  %1298 = vmatpush.msra.mxu0 0.0
  %1299 = vmatpush.msra.mxu0 0.0
  %1300 = vmatpush.msra.mxu0 0.0
  %1301 = vmatpush.msra.mxu0 0.0
  %1302 = vmatpush.msra.mxu0 0.0
  %1303 = vmatpush.msra.mxu0 0.0
  %1304 = vmatpush.msra.mxu0 0.0
  %1305 = vmatpush.msra.mxu0 0.0
  %1306 = vmatpush.msra.mxu0 0.0
  %1307 = vmatpush.msra.mxu0 0.0
  %1308 = vmatpush.msra.mxu0 0.0
  %1309 = vmatpush.msra.mxu0 0.0
  %1310 = vmatpush.msra.mxu0 %v1228
  %1311 = vmatpush.msra.mxu0 %v1226
  %1312 = vmatpush.msra.mxu0 %v1224
  %1313 = vmatpush.msra.mxu0 %v1222
  %1314 = vmatmul.f32.gmra.mxu0 %v836
  %v1315 = vpop.f32.mrf.mxu0
  %v1316 = vadd.f32 %v1293, %v1315
  %1317 = vmatmul.f32.gmra.mxu0 %v839
  %v1318 = vpop.f32.mrf.mxu0
  %v1319 = vadd.f32 %v1296, %v1318
  %1320 = vdwg.mxu0
  %s1321 = scalar_lea.vmem %s8, 32
  %v1322 = vld [vmem:[%s1321] sm:$0xff]
  %v1323 = vld [vmem:[%s1321 + $0x8] sm:$0xff]
  %v1325 = vsel %vm1071, %v1322, 0
  %v1328 = vsel %vm1071, %v1323, 0
  %v1331 = vsel %vm154, %v1273, 0
  %v1334 = vsel %vm154, %v1319, 0
  %1336 = vmatpush.msra.mxu0 0.0
  %1337 = vmatpush.msra.mxu0 0.0
  %1338 = vmatpush.msra.mxu0 0.0
  %1339 = vmatpush.msra.mxu0 0.0
  %1340 = vmatpush.msra.mxu0 0.0
  %1341 = vmatpush.msra.mxu0 0.0
  %1342 = vmatpush.msra.mxu0 0.0
  %1343 = vmatpush.msra.mxu0 0.0
  %1344 = vmatpush.msra.mxu0 0.0
  %1345 = vmatpush.msra.mxu0 0.0
  %1346 = vmatpush.msra.mxu0 0.0
  %1347 = vmatpush.msra.mxu0 0.0
  %1348 = vmatpush.msra.mxu0 0.0
  %1349 = vmatpush.msra.mxu0 0.0
  %1350 = vmatpush.msra.mxu0 %v1331
  %1351 = vmatpush.msra.mxu0 %v1270
  %1352 = vmatmul.f32.gmra.mxu0 %v1325
  %v1353 = vpop.f32.mrf.mxu0
  %v1354 = vadd.f32 0.0, %v1353
  %1355 = vmatmul.f32.gmra.mxu0 %v1328
  %v1356 = vpop.f32.mrf.mxu0
  %v1357 = vadd.f32 0.0, %v1356
  %1358 = vdwg.mxu0
  %1359 = vmatpush.msra.mxu0 0.0
  %1360 = vmatpush.msra.mxu0 0.0
  %1361 = vmatpush.msra.mxu0 0.0
  %1362 = vmatpush.msra.mxu0 0.0
  %1363 = vmatpush.msra.mxu0 0.0
  %1364 = vmatpush.msra.mxu0 0.0
  %1365 = vmatpush.msra.mxu0 0.0
  %1366 = vmatpush.msra.mxu0 0.0
  %1367 = vmatpush.msra.mxu0 0.0
  %1368 = vmatpush.msra.mxu0 0.0
  %1369 = vmatpush.msra.mxu0 0.0
  %1370 = vmatpush.msra.mxu0 0.0
  %1371 = vmatpush.msra.mxu0 0.0
  %1372 = vmatpush.msra.mxu0 0.0
  %1373 = vmatpush.msra.mxu0 %v1334
  %1374 = vmatpush.msra.mxu0 %v1316
  %1375 = vmatmul.f32.gmra.mxu0 %v1325
  %v1376 = vpop.f32.mrf.mxu0
  %v1377 = vadd.f32 0.0, %v1376
  %1378 = vmatmul.f32.gmra.mxu0 %v1328
  %v1379 = vpop.f32.mrf.mxu0
  %v1380 = vadd.f32 0.0, %v1379
  %1381 = vdwg.mxu0
  %v1382 = vadd.f32 %v1160, %v1354
  %v1383 = vadd.f32 %v1183, %v1377
  %v1384 = vadd.f32 %v1163, %v1357
  %v1385 = vadd.f32 %v1186, %v1380
  %s1386 = scalar_lea.vmem %s7, 960
  %v1387 = vld [vmem:[%s1386] sm:$0xff]
  %v1388 = vld [vmem:[%s1386 + $0x8] sm:$0xff]
  %v1389 = vld [vmem:[%s1386 + $0x10] sm:$0xff]
  %v1390 = vld [vmem:[%s1386 + $0x18] sm:$0xff]
  %v1391 = vld [vmem:[%s1386 + $0x20] sm:$0xff]
  %v1392 = vld [vmem:[%s1386 + $0x28] sm:$0xff]
  %v1393 = vld [vmem:[%s1386 + $0x30] sm:$0xff]
  %v1394 = vld [vmem:[%s1386 + $0x38] sm:$0xff]
  %v1395 = vld [vmem:[%s1386 + $0x40] sm:$0xff]
  %v1396 = vld [vmem:[%s1386 + $0x48] sm:$0xff]
  %v1397 = vld [vmem:[%s1386 + $0x50] sm:$0xff]
  %v1398 = vld [vmem:[%s1386 + $0x58] sm:$0xff]
  %v1399 = vld [vmem:[%s1386 + $0x60] sm:$0xff]
  %v1400 = vld [vmem:[%s1386 + $0x68] sm:$0xff]
  %v1401 = vld [vmem:[%s1386 + $0x70] sm:$0xff]
  %v1402 = vld [vmem:[%s1386 + $0x78] sm:$0xff]
  %v1403 = vld [vmem:[%s1386 + $0x80] sm:$0xff]
  %v1404 = vld [vmem:[%s1386 + $0x88] sm:$0xff]
  %v1405 = vld [vmem:[%s1386 + $0x90] sm:$0xff]
  %v1406 = vld [vmem:[%s1386 + $0x98] sm:$0xff]
  %v1407 = vld [vmem:[%s1386 + $0xa0] sm:$0xff]
  %v1408 = vld [vmem:[%s1386 + $0xa8] sm:$0xff]
  %v1409 = vld [vmem:[%s1386 + $0xb0] sm:$0xff]
  %v1410 = vld [vmem:[%s1386 + $0xb8] sm:$0xff]
  %v1411 = vld [vmem:[%s1386 + $0xc0] sm:$0xff]
  %v1412 = vld [vmem:[%s1386 + $0xc8] sm:$0xff]
  %v1413 = vld [vmem:[%s1386 + $0xd0] sm:$0xff]
  %v1414 = vld [vmem:[%s1386 + $0xd8] sm:$0xff]
  %v1415 = vld [vmem:[%s1386 + $0xe0] sm:$0xff]
  %v1416 = vld [vmem:[%s1386 + $0xe8] sm:$0xff]
  %v1417 = vld [vmem:[%s1386 + $0xf0] sm:$0xff]
  %v1418 = vld [vmem:[%s1386 + $0xf8] sm:$0xff]
  %v1419 = vld [vmem:[%s1386 + $0x100] sm:$0xff]
  %v1420 = vld [vmem:[%s1386 + $0x108] sm:$0xff]
  %v1421 = vld [vmem:[%s1386 + $0x110] sm:$0xff]
  %v1422 = vld [vmem:[%s1386 + $0x118] sm:$0xff]
  %v1423 = vld [vmem:[%s1386 + $0x120] sm:$0xff]
  %v1424 = vld [vmem:[%s1386 + $0x128] sm:$0xff]
  %v1425 = vld [vmem:[%s1386 + $0x130] sm:$0xff]
  %v1426 = vld [vmem:[%s1386 + $0x138] sm:$0xff]
  %1427 = vmatpush.msra.mxu0 %v1417
  %1428 = vmatpush.msra.mxu0 %v1415
  %1429 = vmatpush.msra.mxu0 %v1413
  %1430 = vmatpush.msra.mxu0 %v1411
  %1431 = vmatpush.msra.mxu0 %v1409
  %1432 = vmatpush.msra.mxu0 %v1407
  %1433 = vmatpush.msra.mxu0 %v1405
  %1434 = vmatpush.msra.mxu0 %v1403
  %1435 = vmatpush.msra.mxu0 %v1401
  %1436 = vmatpush.msra.mxu0 %v1399
  %1437 = vmatpush.msra.mxu0 %v1397
  %1438 = vmatpush.msra.mxu0 %v1395
  %1439 = vmatpush.msra.mxu0 %v1393
  %1440 = vmatpush.msra.mxu0 %v1391
  %1441 = vmatpush.msra.mxu0 %v1389
  %1442 = vmatpush.msra.mxu0 %v1387
  %1443 = vmatmul.f32.gmra.mxu0 %v790
  %v1444 = vpop.f32.mrf.mxu0
  %v1445 = vadd.f32 0.0, %v1444
  %1446 = vmatmul.f32.gmra.mxu0 %v792
  %v1447 = vpop.f32.mrf.mxu0
  %v1448 = vadd.f32 0.0, %v1447
  %1449 = vdwg.mxu0
  %1450 = vmatpush.msra.mxu0 0.0
  %1451 = vmatpush.msra.mxu0 0.0
  %1452 = vmatpush.msra.mxu0 0.0
  %1453 = vmatpush.msra.mxu0 0.0
  %1454 = vmatpush.msra.mxu0 0.0
  %1455 = vmatpush.msra.mxu0 0.0
  %1456 = vmatpush.msra.mxu0 0.0
  %1457 = vmatpush.msra.mxu0 0.0
  %1458 = vmatpush.msra.mxu0 0.0
  %1459 = vmatpush.msra.mxu0 0.0
  %1460 = vmatpush.msra.mxu0 0.0
  %1461 = vmatpush.msra.mxu0 0.0
  %1462 = vmatpush.msra.mxu0 %v1425
  %1463 = vmatpush.msra.mxu0 %v1423
  %1464 = vmatpush.msra.mxu0 %v1421
  %1465 = vmatpush.msra.mxu0 %v1419
  %1466 = vmatmul.f32.gmra.mxu0 %v836
  %v1467 = vpop.f32.mrf.mxu0
  %v1468 = vadd.f32 %v1445, %v1467
  %1469 = vmatmul.f32.gmra.mxu0 %v839
  %v1470 = vpop.f32.mrf.mxu0
  %v1471 = vadd.f32 %v1448, %v1470
  %1472 = vdwg.mxu0
  %1473 = vmatpush.msra.mxu0 %v1418
  %1474 = vmatpush.msra.mxu0 %v1416
  %1475 = vmatpush.msra.mxu0 %v1414
  %1476 = vmatpush.msra.mxu0 %v1412
  %1477 = vmatpush.msra.mxu0 %v1410
  %1478 = vmatpush.msra.mxu0 %v1408
  %1479 = vmatpush.msra.mxu0 %v1406
  %1480 = vmatpush.msra.mxu0 %v1404
  %1481 = vmatpush.msra.mxu0 %v1402
  %1482 = vmatpush.msra.mxu0 %v1400
  %1483 = vmatpush.msra.mxu0 %v1398
  %1484 = vmatpush.msra.mxu0 %v1396
  %1485 = vmatpush.msra.mxu0 %v1394
  %1486 = vmatpush.msra.mxu0 %v1392
  %1487 = vmatpush.msra.mxu0 %v1390
  %1488 = vmatpush.msra.mxu0 %v1388
  %1489 = vmatmul.f32.gmra.mxu0 %v790
  %v1490 = vpop.f32.mrf.mxu0
  %v1491 = vadd.f32 0.0, %v1490
  %1492 = vmatmul.f32.gmra.mxu0 %v792
  %v1493 = vpop.f32.mrf.mxu0
  %v1494 = vadd.f32 0.0, %v1493
  %1495 = vdwg.mxu0
  %1496 = vmatpush.msra.mxu0 0.0
  %1497 = vmatpush.msra.mxu0 0.0
  %1498 = vmatpush.msra.mxu0 0.0
  %1499 = vmatpush.msra.mxu0 0.0
  %1500 = vmatpush.msra.mxu0 0.0
  %1501 = vmatpush.msra.mxu0 0.0
  %1502 = vmatpush.msra.mxu0 0.0
  %1503 = vmatpush.msra.mxu0 0.0
  %1504 = vmatpush.msra.mxu0 0.0
  %1505 = vmatpush.msra.mxu0 0.0
  %1506 = vmatpush.msra.mxu0 0.0
  %1507 = vmatpush.msra.mxu0 0.0
  %1508 = vmatpush.msra.mxu0 %v1426
  %1509 = vmatpush.msra.mxu0 %v1424
  %1510 = vmatpush.msra.mxu0 %v1422
  %1511 = vmatpush.msra.mxu0 %v1420
  %1512 = vmatmul.f32.gmra.mxu0 %v836
  %v1513 = vpop.f32.mrf.mxu0
  %v1514 = vadd.f32 %v1491, %v1513
  %1515 = vmatmul.f32.gmra.mxu0 %v839
  %v1516 = vpop.f32.mrf.mxu0
  %v1517 = vadd.f32 %v1494, %v1516
  %1518 = vdwg.mxu0
  %s1519 = scalar_lea.vmem %s8, 48
  %v1520 = vld [vmem:[%s1519] sm:$0xff]
  %v1521 = vld [vmem:[%s1519 + $0x8] sm:$0xff]
  %v1523 = vsel %vm1071, %v1520, 0
  %v1526 = vsel %vm1071, %v1521, 0
  %v1529 = vsel %vm154, %v1471, 0
  %v1532 = vsel %vm154, %v1517, 0
  %1534 = vmatpush.msra.mxu0 0.0
  %1535 = vmatpush.msra.mxu0 0.0
  %1536 = vmatpush.msra.mxu0 0.0
  %1537 = vmatpush.msra.mxu0 0.0
  %1538 = vmatpush.msra.mxu0 0.0
  %1539 = vmatpush.msra.mxu0 0.0
  %1540 = vmatpush.msra.mxu0 0.0
  %1541 = vmatpush.msra.mxu0 0.0
  %1542 = vmatpush.msra.mxu0 0.0
  %1543 = vmatpush.msra.mxu0 0.0
  %1544 = vmatpush.msra.mxu0 0.0
  %1545 = vmatpush.msra.mxu0 0.0
  %1546 = vmatpush.msra.mxu0 0.0
  %1547 = vmatpush.msra.mxu0 0.0
  %1548 = vmatpush.msra.mxu0 %v1529
  %1549 = vmatpush.msra.mxu0 %v1468
  %1550 = vmatmul.f32.gmra.mxu0 %v1523
  %v1551 = vpop.f32.mrf.mxu0
  %v1552 = vadd.f32 0.0, %v1551
  %1553 = vmatmul.f32.gmra.mxu0 %v1526
  %v1554 = vpop.f32.mrf.mxu0
  %v1555 = vadd.f32 0.0, %v1554
  %1556 = vdwg.mxu0
  %1557 = vmatpush.msra.mxu0 0.0
  %1558 = vmatpush.msra.mxu0 0.0
  %1559 = vmatpush.msra.mxu0 0.0
  %1560 = vmatpush.msra.mxu0 0.0
  %1561 = vmatpush.msra.mxu0 0.0
  %1562 = vmatpush.msra.mxu0 0.0
  %1563 = vmatpush.msra.mxu0 0.0
  %1564 = vmatpush.msra.mxu0 0.0
  %1565 = vmatpush.msra.mxu0 0.0
  %1566 = vmatpush.msra.mxu0 0.0
  %1567 = vmatpush.msra.mxu0 0.0
  %1568 = vmatpush.msra.mxu0 0.0
  %1569 = vmatpush.msra.mxu0 0.0
  %1570 = vmatpush.msra.mxu0 0.0
  %1571 = vmatpush.msra.mxu0 %v1532
  %1572 = vmatpush.msra.mxu0 %v1514
  %1573 = vmatmul.f32.gmra.mxu0 %v1523
  %v1574 = vpop.f32.mrf.mxu0
  %v1575 = vadd.f32 0.0, %v1574
  %1576 = vmatmul.f32.gmra.mxu0 %v1526
  %v1577 = vpop.f32.mrf.mxu0
  %v1578 = vadd.f32 0.0, %v1577
  %1579 = vdwg.mxu0
  %v1580 = vadd.f32 %v1382, %v1552
  %v1581 = vadd.f32 %v1383, %v1575
  %v1582 = vadd.f32 %v1384, %v1555
  %v1583 = vadd.f32 %v1385, %v1578
  %v1584 = vld [vmem:[%s9] sm:$0x3]
  %v1586 = vperm.slane %v1584, 0
  %v1587 = vperm.slane %v1584, 1
  %v1590 = vadd.f32 %v1580, %v1586
  %v1591 = vadd.f32 %v1581, %v1587
  %v1592 = vadd.f32 %v1582, %v1586
  %v1593 = vadd.f32 %v1583, %v1587
  %v1594 = vmax.f32 %v1590, 0.0
  %v1595 = vmax.f32 %v1591, 0.0
  %v1596 = vmax.f32 %v1592, 0.0
  %v1597 = vmax.f32 %v1593, 0.0
  %v1598 = vld [vmem:[%s10] sm:$0xff]
  %v1599 = vld [vmem:[%s10 + $0x8] sm:$0xff]
  %v1600 = vld [vmem:[%s10 + $0x10] sm:$0xff]
  %v1601 = vld [vmem:[%s10 + $0x18] sm:$0xff]
  %v1602 = vld [vmem:[%s10 + $0x20] sm:$0xff]
  %v1603 = vld [vmem:[%s10 + $0x28] sm:$0xff]
  %v1604 = vld [vmem:[%s10 + $0x30] sm:$0xff]
  %v1605 = vld [vmem:[%s10 + $0x38] sm:$0xff]
  %v1606 = vld [vmem:[%s10 + $0x40] sm:$0xff]
  %v1607 = vld [vmem:[%s10 + $0x48] sm:$0xff]
  %v1608 = vld [vmem:[%s10 + $0x50] sm:$0xff]
  %v1609 = vld [vmem:[%s10 + $0x58] sm:$0xff]
  %v1610 = vld [vmem:[%s10 + $0x60] sm:$0xff]
  %v1611 = vld [vmem:[%s10 + $0x68] sm:$0xff]
  %v1612 = vld [vmem:[%s10 + $0x70] sm:$0xff]
  %v1613 = vld [vmem:[%s10 + $0x78] sm:$0xff]
  %v1614 = vld [vmem:[%s10 + $0x80] sm:$0xff]
  %v1615 = vld [vmem:[%s10 + $0x88] sm:$0xff]
  %v1616 = vld [vmem:[%s10 + $0x90] sm:$0xff]
  %v1617 = vld [vmem:[%s10 + $0x98] sm:$0xff]
  %v1618 = vld [vmem:[%s10 + $0xa0] sm:$0xff]
  %v1619 = vld [vmem:[%s10 + $0xa8] sm:$0xff]
  %v1620 = vld [vmem:[%s10 + $0xb0] sm:$0xff]
  %v1621 = vld [vmem:[%s10 + $0xb8] sm:$0xff]
  %v1622 = vld [vmem:[%s10 + $0xc0] sm:$0xff]
  %v1623 = vld [vmem:[%s10 + $0xc8] sm:$0xff]
  %v1624 = vld [vmem:[%s10 + $0xd0] sm:$0xff]
  %v1625 = vld [vmem:[%s10 + $0xd8] sm:$0xff]
  %v1626 = vld [vmem:[%s10 + $0xe0] sm:$0xff]
  %v1627 = vld [vmem:[%s10 + $0xe8] sm:$0xff]
  %v1628 = vld [vmem:[%s10 + $0xf0] sm:$0xff]
  %v1629 = vld [vmem:[%s10 + $0xf8] sm:$0xff]
  %1630 = vmatpush.msra.mxu0 %v1613
  %1631 = vmatpush.msra.mxu0 %v1612
  %1632 = vmatpush.msra.mxu0 %v1611
  %1633 = vmatpush.msra.mxu0 %v1610
  %1634 = vmatpush.msra.mxu0 %v1609
  %1635 = vmatpush.msra.mxu0 %v1608
  %1636 = vmatpush.msra.mxu0 %v1607
  %1637 = vmatpush.msra.mxu0 %v1606
  %1638 = vmatpush.msra.mxu0 %v1605
  %1639 = vmatpush.msra.mxu0 %v1604
  %1640 = vmatpush.msra.mxu0 %v1603
  %1641 = vmatpush.msra.mxu0 %v1602
  %1642 = vmatpush.msra.mxu0 %v1601
  %1643 = vmatpush.msra.mxu0 %v1600
  %1644 = vmatpush.msra.mxu0 %v1599
  %1645 = vmatpush.msra.mxu0 %v1598
  %1646 = vmatmul.f32.gmra.mxu0 %v1594
  %v1647 = vpop.f32.mrf.mxu0
  %v1648 = vadd.f32 0.0, %v1647
  %1649 = vmatmul.f32.gmra.mxu0 %v1596
  %v1650 = vpop.f32.mrf.mxu0
  %v1651 = vadd.f32 0.0, %v1650
  %1652 = vdwg.mxu0
  %1653 = vmatpush.msra.mxu0 %v1629
  %1654 = vmatpush.msra.mxu0 %v1628
  %1655 = vmatpush.msra.mxu0 %v1627
  %1656 = vmatpush.msra.mxu0 %v1626
  %1657 = vmatpush.msra.mxu0 %v1625
  %1658 = vmatpush.msra.mxu0 %v1624
  %1659 = vmatpush.msra.mxu0 %v1623
  %1660 = vmatpush.msra.mxu0 %v1622
  %1661 = vmatpush.msra.mxu0 %v1621
  %1662 = vmatpush.msra.mxu0 %v1620
  %1663 = vmatpush.msra.mxu0 %v1619
  %1664 = vmatpush.msra.mxu0 %v1618
  %1665 = vmatpush.msra.mxu0 %v1617
  %1666 = vmatpush.msra.mxu0 %v1616
  %1667 = vmatpush.msra.mxu0 %v1615
  %1668 = vmatpush.msra.mxu0 %v1614
  %1669 = vmatmul.f32.gmra.mxu0 %v1595
  %v1670 = vpop.f32.mrf.mxu0
  %v1671 = vadd.f32 %v1648, %v1670
  %1672 = vmatmul.f32.gmra.mxu0 %v1597
  %v1673 = vpop.f32.mrf.mxu0
  %v1674 = vadd.f32 %v1651, %v1673
  %1675 = vdwg.mxu0
  %v1676 = vld [vmem:[%s11] sm:$0xff]
  %v1677 = vld [vmem:[%s11 + $0x8] sm:$0xff]
  %v1678 = vld [vmem:[%s11 + $0x10] sm:$0xff]
  %v1679 = vld [vmem:[%s11 + $0x18] sm:$0xff]
  %s1680 = scalar_lea.vmem %s10, 256
  %v1681 = vld [vmem:[%s1680] sm:$0xff]
  %v1682 = vld [vmem:[%s1680 + $0x8] sm:$0xff]
  %v1683 = vld [vmem:[%s1680 + $0x10] sm:$0xff]
  %v1684 = vld [vmem:[%s1680 + $0x18] sm:$0xff]
  %v1685 = vld [vmem:[%s1680 + $0x20] sm:$0xff]
  %v1686 = vld [vmem:[%s1680 + $0x28] sm:$0xff]
  %v1687 = vld [vmem:[%s1680 + $0x30] sm:$0xff]
  %v1688 = vld [vmem:[%s1680 + $0x38] sm:$0xff]
  %v1689 = vld [vmem:[%s1680 + $0x40] sm:$0xff]
  %v1690 = vld [vmem:[%s1680 + $0x48] sm:$0xff]
  %v1691 = vld [vmem:[%s1680 + $0x50] sm:$0xff]
  %v1692 = vld [vmem:[%s1680 + $0x58] sm:$0xff]
  %v1693 = vld [vmem:[%s1680 + $0x60] sm:$0xff]
  %v1694 = vld [vmem:[%s1680 + $0x68] sm:$0xff]
  %v1695 = vld [vmem:[%s1680 + $0x70] sm:$0xff]
  %v1696 = vld [vmem:[%s1680 + $0x78] sm:$0xff]
  %v1697 = vld [vmem:[%s1680 + $0x80] sm:$0xff]
  %v1698 = vld [vmem:[%s1680 + $0x88] sm:$0xff]
  %v1699 = vld [vmem:[%s1680 + $0x90] sm:$0xff]
  %v1700 = vld [vmem:[%s1680 + $0x98] sm:$0xff]
  %v1701 = vld [vmem:[%s1680 + $0xa0] sm:$0xff]
  %v1702 = vld [vmem:[%s1680 + $0xa8] sm:$0xff]
  %v1703 = vld [vmem:[%s1680 + $0xb0] sm:$0xff]
  %v1704 = vld [vmem:[%s1680 + $0xb8] sm:$0xff]
  %v1705 = vld [vmem:[%s1680 + $0xc0] sm:$0xff]
  %v1706 = vld [vmem:[%s1680 + $0xc8] sm:$0xff]
  %v1707 = vld [vmem:[%s1680 + $0xd0] sm:$0xff]
  %v1708 = vld [vmem:[%s1680 + $0xd8] sm:$0xff]
  %v1709 = vld [vmem:[%s1680 + $0xe0] sm:$0xff]
  %v1710 = vld [vmem:[%s1680 + $0xe8] sm:$0xff]
  %v1711 = vld [vmem:[%s1680 + $0xf0] sm:$0xff]
  %v1712 = vld [vmem:[%s1680 + $0xf8] sm:$0xff]
  %1713 = vmatpush.msra.mxu0 %v1696
  %1714 = vmatpush.msra.mxu0 %v1695
  %1715 = vmatpush.msra.mxu0 %v1694
  %1716 = vmatpush.msra.mxu0 %v1693
  %1717 = vmatpush.msra.mxu0 %v1692
  %1718 = vmatpush.msra.mxu0 %v1691
  %1719 = vmatpush.msra.mxu0 %v1690
  %1720 = vmatpush.msra.mxu0 %v1689
  %1721 = vmatpush.msra.mxu0 %v1688
  %1722 = vmatpush.msra.mxu0 %v1687
  %1723 = vmatpush.msra.mxu0 %v1686
  %1724 = vmatpush.msra.mxu0 %v1685
  %1725 = vmatpush.msra.mxu0 %v1684
  %1726 = vmatpush.msra.mxu0 %v1683
  %1727 = vmatpush.msra.mxu0 %v1682
  %1728 = vmatpush.msra.mxu0 %v1681
  %1729 = vmatmul.f32.gmra.mxu0 %v1594
  %v1730 = vpop.f32.mrf.mxu0
  %v1731 = vadd.f32 0.0, %v1730
  %1732 = vmatmul.f32.gmra.mxu0 %v1596
  %v1733 = vpop.f32.mrf.mxu0
  %v1734 = vadd.f32 0.0, %v1733
  %1735 = vdwg.mxu0
  %1736 = vmatpush.msra.mxu0 %v1712
  %1737 = vmatpush.msra.mxu0 %v1711
  %1738 = vmatpush.msra.mxu0 %v1710
  %1739 = vmatpush.msra.mxu0 %v1709
  %1740 = vmatpush.msra.mxu0 %v1708
  %1741 = vmatpush.msra.mxu0 %v1707
  %1742 = vmatpush.msra.mxu0 %v1706
  %1743 = vmatpush.msra.mxu0 %v1705
  %1744 = vmatpush.msra.mxu0 %v1704
  %1745 = vmatpush.msra.mxu0 %v1703
  %1746 = vmatpush.msra.mxu0 %v1702
  %1747 = vmatpush.msra.mxu0 %v1701
  %1748 = vmatpush.msra.mxu0 %v1700
  %1749 = vmatpush.msra.mxu0 %v1699
  %1750 = vmatpush.msra.mxu0 %v1698
  %1751 = vmatpush.msra.mxu0 %v1697
  %1752 = vmatmul.f32.gmra.mxu0 %v1595
  %v1753 = vpop.f32.mrf.mxu0
  %v1754 = vadd.f32 %v1731, %v1753
  %1755 = vmatmul.f32.gmra.mxu0 %v1597
  %v1756 = vpop.f32.mrf.mxu0
  %v1757 = vadd.f32 %v1734, %v1756
  %1758 = vdwg.mxu0
  %s1759 = scalar_lea.vmem %s11, 32
  %v1760 = vld [vmem:[%s1759] sm:$0xff]
  %v1761 = vld [vmem:[%s1759 + $0x8] sm:$0xff]
  %v1762 = vld [vmem:[%s1759 + $0x10] sm:$0xff]
  %v1763 = vld [vmem:[%s1759 + $0x18] sm:$0xff]
  %vm1764 = vcmask 130048
  %v1766 = vsel %vm1764, %v1760, 0
  %v1769 = vsel %vm1764, %v1761, 0
  %v1772 = vsel %vm1764, %v1762, 0
  %v1775 = vsel %vm1764, %v1763, 0
  %1777 = vmatpush.msra.mxu0 0.0
  %1778 = vmatpush.msra.mxu0 0.0
  %1779 = vmatpush.msra.mxu0 0.0
  %1780 = vmatpush.msra.mxu0 0.0
  %1781 = vmatpush.msra.mxu0 0.0
  %1782 = vmatpush.msra.mxu0 0.0
  %1783 = vmatpush.msra.mxu0 0.0
  %1784 = vmatpush.msra.mxu0 0.0
  %1785 = vmatpush.msra.mxu0 0.0
  %1786 = vmatpush.msra.mxu0 0.0
  %1787 = vmatpush.msra.mxu0 0.0
  %1788 = vmatpush.msra.mxu0 0.0
  %1789 = vmatpush.msra.mxu0 0.0
  %1790 = vmatpush.msra.mxu0 0.0
  %1791 = vmatpush.msra.mxu0 %v1757
  %1792 = vmatpush.msra.mxu0 %v1754
  %1793 = vmatmul.f32.gmra.mxu0 %v1766
  %v1794 = vpop.f32.mrf.mxu0
  %v1795 = vadd.f32 0.0, %v1794
  %1796 = vmatmul.f32.gmra.mxu0 %v1769
  %v1797 = vpop.f32.mrf.mxu0
  %v1798 = vadd.f32 0.0, %v1797
  %1799 = vmatmul.f32.gmra.mxu0 %v1772
  %v1800 = vpop.f32.mrf.mxu0
  %v1801 = vadd.f32 0.0, %v1800
  %1802 = vmatmul.f32.gmra.mxu0 %v1775
  %v1803 = vpop.f32.mrf.mxu0
  %v1804 = vadd.f32 0.0, %v1803
  %1805 = vdwg.mxu0
  %v1807 = vsel %vm1764, %v1676, 0
  %v1810 = vsel %vm1764, %v1677, 0
  %v1813 = vsel %vm1764, %v1678, 0
  %v1816 = vsel %vm1764, %v1679, 0
  %1818 = vmatpush.msra.mxu0 0.0
  %1819 = vmatpush.msra.mxu0 0.0
  %1820 = vmatpush.msra.mxu0 0.0
  %1821 = vmatpush.msra.mxu0 0.0
  %1822 = vmatpush.msra.mxu0 0.0
  %1823 = vmatpush.msra.mxu0 0.0
  %1824 = vmatpush.msra.mxu0 0.0
  %1825 = vmatpush.msra.mxu0 0.0
  %1826 = vmatpush.msra.mxu0 0.0
  %1827 = vmatpush.msra.mxu0 0.0
  %1828 = vmatpush.msra.mxu0 0.0
  %1829 = vmatpush.msra.mxu0 0.0
  %1830 = vmatpush.msra.mxu0 0.0
  %1831 = vmatpush.msra.mxu0 0.0
  %1832 = vmatpush.msra.mxu0 %v1674
  %1833 = vmatpush.msra.mxu0 %v1671
  %1834 = vmatmul.f32.gmra.mxu0 %v1807
  %v1835 = vpop.f32.mrf.mxu0
  %v1836 = vadd.f32 %v1795, %v1835
  %1837 = vmatmul.f32.gmra.mxu0 %v1810
  %v1838 = vpop.f32.mrf.mxu0
  %v1839 = vadd.f32 %v1798, %v1838
  %1840 = vmatmul.f32.gmra.mxu0 %v1813
  %v1841 = vpop.f32.mrf.mxu0
  %v1842 = vadd.f32 %v1801, %v1841
  %1843 = vmatmul.f32.gmra.mxu0 %v1816
  %v1844 = vpop.f32.mrf.mxu0
  %v1845 = vadd.f32 %v1804, %v1844
  %1846 = vdwg.mxu0
  %s1847 = scalar_lea.vmem %s10, 512
  %v1848 = vld [vmem:[%s1847] sm:$0xff]
  %v1849 = vld [vmem:[%s1847 + $0x8] sm:$0xff]
  %v1850 = vld [vmem:[%s1847 + $0x10] sm:$0xff]
  %v1851 = vld [vmem:[%s1847 + $0x18] sm:$0xff]
  %v1852 = vld [vmem:[%s1847 + $0x20] sm:$0xff]
  %v1853 = vld [vmem:[%s1847 + $0x28] sm:$0xff]
  %v1854 = vld [vmem:[%s1847 + $0x30] sm:$0xff]
  %v1855 = vld [vmem:[%s1847 + $0x38] sm:$0xff]
  %v1856 = vld [vmem:[%s1847 + $0x40] sm:$0xff]
  %v1857 = vld [vmem:[%s1847 + $0x48] sm:$0xff]
  %v1858 = vld [vmem:[%s1847 + $0x50] sm:$0xff]
  %v1859 = vld [vmem:[%s1847 + $0x58] sm:$0xff]
  %v1860 = vld [vmem:[%s1847 + $0x60] sm:$0xff]
  %v1861 = vld [vmem:[%s1847 + $0x68] sm:$0xff]
  %v1862 = vld [vmem:[%s1847 + $0x70] sm:$0xff]
  %v1863 = vld [vmem:[%s1847 + $0x78] sm:$0xff]
  %v1864 = vld [vmem:[%s1847 + $0x80] sm:$0xff]
  %v1865 = vld [vmem:[%s1847 + $0x88] sm:$0xff]
  %v1866 = vld [vmem:[%s1847 + $0x90] sm:$0xff]
  %v1867 = vld [vmem:[%s1847 + $0x98] sm:$0xff]
  %v1868 = vld [vmem:[%s1847 + $0xa0] sm:$0xff]
  %v1869 = vld [vmem:[%s1847 + $0xa8] sm:$0xff]
  %v1870 = vld [vmem:[%s1847 + $0xb0] sm:$0xff]
  %v1871 = vld [vmem:[%s1847 + $0xb8] sm:$0xff]
  %v1872 = vld [vmem:[%s1847 + $0xc0] sm:$0xff]
  %v1873 = vld [vmem:[%s1847 + $0xc8] sm:$0xff]
  %v1874 = vld [vmem:[%s1847 + $0xd0] sm:$0xff]
  %v1875 = vld [vmem:[%s1847 + $0xd8] sm:$0xff]
  %v1876 = vld [vmem:[%s1847 + $0xe0] sm:$0xff]
  %v1877 = vld [vmem:[%s1847 + $0xe8] sm:$0xff]
  %v1878 = vld [vmem:[%s1847 + $0xf0] sm:$0xff]
  %v1879 = vld [vmem:[%s1847 + $0xf8] sm:$0xff]
  %1880 = vmatpush.msra.mxu0 %v1863
  %1881 = vmatpush.msra.mxu0 %v1862
  %1882 = vmatpush.msra.mxu0 %v1861
  %1883 = vmatpush.msra.mxu0 %v1860
  %1884 = vmatpush.msra.mxu0 %v1859
  %1885 = vmatpush.msra.mxu0 %v1858
  %1886 = vmatpush.msra.mxu0 %v1857
  %1887 = vmatpush.msra.mxu0 %v1856
  %1888 = vmatpush.msra.mxu0 %v1855
  %1889 = vmatpush.msra.mxu0 %v1854
  %1890 = vmatpush.msra.mxu0 %v1853
  %1891 = vmatpush.msra.mxu0 %v1852
  %1892 = vmatpush.msra.mxu0 %v1851
  %1893 = vmatpush.msra.mxu0 %v1850
  %1894 = vmatpush.msra.mxu0 %v1849
  %1895 = vmatpush.msra.mxu0 %v1848
  %1896 = vmatmul.f32.gmra.mxu0 %v1594
  %v1897 = vpop.f32.mrf.mxu0
  %v1898 = vadd.f32 0.0, %v1897
  %1899 = vmatmul.f32.gmra.mxu0 %v1596
  %v1900 = vpop.f32.mrf.mxu0
  %v1901 = vadd.f32 0.0, %v1900
  %1902 = vdwg.mxu0
  %1903 = vmatpush.msra.mxu0 %v1879
  %1904 = vmatpush.msra.mxu0 %v1878
  %1905 = vmatpush.msra.mxu0 %v1877
  %1906 = vmatpush.msra.mxu0 %v1876
  %1907 = vmatpush.msra.mxu0 %v1875
  %1908 = vmatpush.msra.mxu0 %v1874
  %1909 = vmatpush.msra.mxu0 %v1873
  %1910 = vmatpush.msra.mxu0 %v1872
  %1911 = vmatpush.msra.mxu0 %v1871
  %1912 = vmatpush.msra.mxu0 %v1870
  %1913 = vmatpush.msra.mxu0 %v1869
  %1914 = vmatpush.msra.mxu0 %v1868
  %1915 = vmatpush.msra.mxu0 %v1867
  %1916 = vmatpush.msra.mxu0 %v1866
  %1917 = vmatpush.msra.mxu0 %v1865
  %1918 = vmatpush.msra.mxu0 %v1864
  %1919 = vmatmul.f32.gmra.mxu0 %v1595
  %v1920 = vpop.f32.mrf.mxu0
  %v1921 = vadd.f32 %v1898, %v1920
  %1922 = vmatmul.f32.gmra.mxu0 %v1597
  %v1923 = vpop.f32.mrf.mxu0
  %v1924 = vadd.f32 %v1901, %v1923
  %1925 = vdwg.mxu0
  %s1926 = scalar_lea.vmem %s11, 64
  %v1927 = vld [vmem:[%s1926] sm:$0xff]
  %v1928 = vld [vmem:[%s1926 + $0x8] sm:$0xff]
  %v1929 = vld [vmem:[%s1926 + $0x10] sm:$0xff]
  %v1930 = vld [vmem:[%s1926 + $0x18] sm:$0xff]
  %v1932 = vsel %vm1764, %v1927, 0
  %v1935 = vsel %vm1764, %v1928, 0
  %v1938 = vsel %vm1764, %v1929, 0
  %v1941 = vsel %vm1764, %v1930, 0
  %1943 = vmatpush.msra.mxu0 0.0
  %1944 = vmatpush.msra.mxu0 0.0
  %1945 = vmatpush.msra.mxu0 0.0
  %1946 = vmatpush.msra.mxu0 0.0
  %1947 = vmatpush.msra.mxu0 0.0
  %1948 = vmatpush.msra.mxu0 0.0
  %1949 = vmatpush.msra.mxu0 0.0
  %1950 = vmatpush.msra.mxu0 0.0
  %1951 = vmatpush.msra.mxu0 0.0
  %1952 = vmatpush.msra.mxu0 0.0
  %1953 = vmatpush.msra.mxu0 0.0
  %1954 = vmatpush.msra.mxu0 0.0
  %1955 = vmatpush.msra.mxu0 0.0
  %1956 = vmatpush.msra.mxu0 0.0
  %1957 = vmatpush.msra.mxu0 %v1924
  %1958 = vmatpush.msra.mxu0 %v1921
  %1959 = vmatmul.f32.gmra.mxu0 %v1932
  %v1960 = vpop.f32.mrf.mxu0
  %v1961 = vadd.f32 0.0, %v1960
  %1962 = vmatmul.f32.gmra.mxu0 %v1935
  %v1963 = vpop.f32.mrf.mxu0
  %v1964 = vadd.f32 0.0, %v1963
  %1965 = vmatmul.f32.gmra.mxu0 %v1938
  %v1966 = vpop.f32.mrf.mxu0
  %v1967 = vadd.f32 0.0, %v1966
  %1968 = vmatmul.f32.gmra.mxu0 %v1941
  %v1969 = vpop.f32.mrf.mxu0
  %v1970 = vadd.f32 0.0, %v1969
  %1971 = vdwg.mxu0
  %v1972 = vadd.f32 %v1836, %v1961
  %v1973 = vadd.f32 %v1839, %v1964
  %v1974 = vadd.f32 %v1842, %v1967
  %v1975 = vadd.f32 %v1845, %v1970
  %s1976 = scalar_lea.vmem %s10, 768
  %v1977 = vld [vmem:[%s1976] sm:$0xff]
  %v1978 = vld [vmem:[%s1976 + $0x8] sm:$0xff]
  %v1979 = vld [vmem:[%s1976 + $0x10] sm:$0xff]
  %v1980 = vld [vmem:[%s1976 + $0x18] sm:$0xff]
  %v1981 = vld [vmem:[%s1976 + $0x20] sm:$0xff]
  %v1982 = vld [vmem:[%s1976 + $0x28] sm:$0xff]
  %v1983 = vld [vmem:[%s1976 + $0x30] sm:$0xff]
  %v1984 = vld [vmem:[%s1976 + $0x38] sm:$0xff]
  %v1985 = vld [vmem:[%s1976 + $0x40] sm:$0xff]
  %v1986 = vld [vmem:[%s1976 + $0x48] sm:$0xff]
  %v1987 = vld [vmem:[%s1976 + $0x50] sm:$0xff]
  %v1988 = vld [vmem:[%s1976 + $0x58] sm:$0xff]
  %v1989 = vld [vmem:[%s1976 + $0x60] sm:$0xff]
  %v1990 = vld [vmem:[%s1976 + $0x68] sm:$0xff]
  %v1991 = vld [vmem:[%s1976 + $0x70] sm:$0xff]
  %v1992 = vld [vmem:[%s1976 + $0x78] sm:$0xff]
  %v1993 = vld [vmem:[%s1976 + $0x80] sm:$0xff]
  %v1994 = vld [vmem:[%s1976 + $0x88] sm:$0xff]
  %v1995 = vld [vmem:[%s1976 + $0x90] sm:$0xff]
  %v1996 = vld [vmem:[%s1976 + $0x98] sm:$0xff]
  %v1997 = vld [vmem:[%s1976 + $0xa0] sm:$0xff]
  %v1998 = vld [vmem:[%s1976 + $0xa8] sm:$0xff]
  %v1999 = vld [vmem:[%s1976 + $0xb0] sm:$0xff]
  %v2000 = vld [vmem:[%s1976 + $0xb8] sm:$0xff]
  %v2001 = vld [vmem:[%s1976 + $0xc0] sm:$0xff]
  %v2002 = vld [vmem:[%s1976 + $0xc8] sm:$0xff]
  %v2003 = vld [vmem:[%s1976 + $0xd0] sm:$0xff]
  %v2004 = vld [vmem:[%s1976 + $0xd8] sm:$0xff]
  %v2005 = vld [vmem:[%s1976 + $0xe0] sm:$0xff]
  %v2006 = vld [vmem:[%s1976 + $0xe8] sm:$0xff]
  %v2007 = vld [vmem:[%s1976 + $0xf0] sm:$0xff]
  %v2008 = vld [vmem:[%s1976 + $0xf8] sm:$0xff]
  %2009 = vmatpush.msra.mxu0 %v1992
  %2010 = vmatpush.msra.mxu0 %v1991
  %2011 = vmatpush.msra.mxu0 %v1990
  %2012 = vmatpush.msra.mxu0 %v1989
  %2013 = vmatpush.msra.mxu0 %v1988
  %2014 = vmatpush.msra.mxu0 %v1987
  %2015 = vmatpush.msra.mxu0 %v1986
  %2016 = vmatpush.msra.mxu0 %v1985
  %2017 = vmatpush.msra.mxu0 %v1984
  %2018 = vmatpush.msra.mxu0 %v1983
  %2019 = vmatpush.msra.mxu0 %v1982
  %2020 = vmatpush.msra.mxu0 %v1981
  %2021 = vmatpush.msra.mxu0 %v1980
  %2022 = vmatpush.msra.mxu0 %v1979
  %2023 = vmatpush.msra.mxu0 %v1978
  %2024 = vmatpush.msra.mxu0 %v1977
  %2025 = vmatmul.f32.gmra.mxu0 %v1594
  %v2026 = vpop.f32.mrf.mxu0
  %v2027 = vadd.f32 0.0, %v2026
  %2028 = vmatmul.f32.gmra.mxu0 %v1596
  %v2029 = vpop.f32.mrf.mxu0
  %v2030 = vadd.f32 0.0, %v2029
  %2031 = vdwg.mxu0
  %2032 = vmatpush.msra.mxu0 %v2008
  %2033 = vmatpush.msra.mxu0 %v2007
  %2034 = vmatpush.msra.mxu0 %v2006
  %2035 = vmatpush.msra.mxu0 %v2005
  %2036 = vmatpush.msra.mxu0 %v2004
  %2037 = vmatpush.msra.mxu0 %v2003
  %2038 = vmatpush.msra.mxu0 %v2002
  %2039 = vmatpush.msra.mxu0 %v2001
  %2040 = vmatpush.msra.mxu0 %v2000
  %2041 = vmatpush.msra.mxu0 %v1999
  %2042 = vmatpush.msra.mxu0 %v1998
  %2043 = vmatpush.msra.mxu0 %v1997
  %2044 = vmatpush.msra.mxu0 %v1996
  %2045 = vmatpush.msra.mxu0 %v1995
  %2046 = vmatpush.msra.mxu0 %v1994
  %2047 = vmatpush.msra.mxu0 %v1993
  %2048 = vmatmul.f32.gmra.mxu0 %v1595
  %v2049 = vpop.f32.mrf.mxu0
  %v2050 = vadd.f32 %v2027, %v2049
  %2051 = vmatmul.f32.gmra.mxu0 %v1597
  %v2052 = vpop.f32.mrf.mxu0
  %v2053 = vadd.f32 %v2030, %v2052
  %2054 = vdwg.mxu0
  %s2055 = scalar_lea.vmem %s11, 96
  %v2056 = vld [vmem:[%s2055] sm:$0xff]
  %v2057 = vld [vmem:[%s2055 + $0x8] sm:$0xff]
  %v2058 = vld [vmem:[%s2055 + $0x10] sm:$0xff]
  %v2059 = vld [vmem:[%s2055 + $0x18] sm:$0xff]
  %v2061 = vsel %vm1764, %v2056, 0
  %v2064 = vsel %vm1764, %v2057, 0
  %v2067 = vsel %vm1764, %v2058, 0
  %v2070 = vsel %vm1764, %v2059, 0
  %2072 = vmatpush.msra.mxu0 0.0
  %2073 = vmatpush.msra.mxu0 0.0
  %2074 = vmatpush.msra.mxu0 0.0
  %2075 = vmatpush.msra.mxu0 0.0
  %2076 = vmatpush.msra.mxu0 0.0
  %2077 = vmatpush.msra.mxu0 0.0
  %2078 = vmatpush.msra.mxu0 0.0
  %2079 = vmatpush.msra.mxu0 0.0
  %2080 = vmatpush.msra.mxu0 0.0
  %2081 = vmatpush.msra.mxu0 0.0
  %2082 = vmatpush.msra.mxu0 0.0
  %2083 = vmatpush.msra.mxu0 0.0
  %2084 = vmatpush.msra.mxu0 0.0
  %2085 = vmatpush.msra.mxu0 0.0
  %2086 = vmatpush.msra.mxu0 %v2053
  %2087 = vmatpush.msra.mxu0 %v2050
  %2088 = vmatmul.f32.gmra.mxu0 %v2061
  %v2089 = vpop.f32.mrf.mxu0
  %v2090 = vadd.f32 0.0, %v2089
  %2091 = vmatmul.f32.gmra.mxu0 %v2064
  %v2092 = vpop.f32.mrf.mxu0
  %v2093 = vadd.f32 0.0, %v2092
  %2094 = vmatmul.f32.gmra.mxu0 %v2067
  %v2095 = vpop.f32.mrf.mxu0
  %v2096 = vadd.f32 0.0, %v2095
  %2097 = vmatmul.f32.gmra.mxu0 %v2070
  %v2098 = vpop.f32.mrf.mxu0
  %v2099 = vadd.f32 0.0, %v2098
  %2100 = vdwg.mxu0
  %v2101 = vadd.f32 %v1972, %v2090
  %v2102 = vadd.f32 %v1973, %v2093
  %v2103 = vadd.f32 %v1974, %v2096
  %v2104 = vadd.f32 %v1975, %v2099
  %v2105 = vld [vmem:[%s12] sm:$0x1]
  %v2107 = vperm.slane %v2105, 0
  %v2109 = vadd.f32 %v2101, %v2107
  %v2110 = vadd.f32 %v2102, %v2107
  %v2111 = vadd.f32 %v2103, %v2107
  %v2112 = vadd.f32 %v2104, %v2107
  %v2113 = vxor.u32 %v2109, 2147483648
  %v2114 = vxor.u32 %v2110, 2147483648
  %v2115 = vxor.u32 %v2111, 2147483648
  %v2116 = vxor.u32 %v2112, 2147483648
  %v2117 = vmul.f32 %v2113, 1.442695
  %v2118 = vpow.pop %v2117
  %v2119 = vmul.f32 %v2114, 1.442695
  %v2120 = vpow.pop %v2119
  %v2121 = vmul.f32 %v2115, 1.442695
  %v2122 = vpow.pop %v2121
  %v2123 = vmul.f32 %v2116, 1.442695
  %v2124 = vpow.pop %v2123
  %v2125 = vadd.f32 %v2118, 1.0
  %v2126 = vadd.f32 %v2120, 1.0
  %v2127 = vadd.f32 %v2122, 1.0
  %v2128 = vadd.f32 %v2124, 1.0
  %v2129 = vrcp.pop %v2125
  %v2130 = vmul.f32 %v2125, %v2129
  %v2131 = vsub.f32 1.0, %v2130
  %v2132 = vmul.f32 %v2129, %v2131
  %v2133 = vadd.f32 %v2129, %v2132
  %vm2134 = vweird.f32 %v2125
  %vm2135 = vweird.f32 %v2129
  %vm2136 = vmor %vm2134, %vm2135
  %v2137 = vsel %vm2136, %v2129, %v2133
  %v2138 = vand.u32 2147483647, %v2125
  %vm2139 = vcmp.eq.f32.partialorder %v2138, 8.507059e+37
  %v2140 = vand.u32 %v2125, 2147483648
  %v2141 = vor.u32 1.1754944e-38, %v2140
  %v2142 = vsel %vm2139, %v2141, %v2137
  %v2143 = vmul.f32 1.0, %v2142
  %v2144 = vrcp.pop %v2126
  %v2145 = vmul.f32 %v2126, %v2144
  %v2146 = vsub.f32 1.0, %v2145
  %v2147 = vmul.f32 %v2144, %v2146
  %v2148 = vadd.f32 %v2144, %v2147
  %vm2149 = vweird.f32 %v2126
  %vm2150 = vweird.f32 %v2144
  %vm2151 = vmor %vm2149, %vm2150
  %v2152 = vsel %vm2151, %v2144, %v2148
  %v2153 = vand.u32 2147483647, %v2126
  %vm2154 = vcmp.eq.f32.partialorder %v2153, 8.507059e+37
  %v2155 = vand.u32 %v2126, 2147483648
  %v2156 = vor.u32 1.1754944e-38, %v2155
  %v2157 = vsel %vm2154, %v2156, %v2152
  %v2158 = vmul.f32 1.0, %v2157
  %v2159 = vrcp.pop %v2127
  %v2160 = vmul.f32 %v2127, %v2159
  %v2161 = vsub.f32 1.0, %v2160
  %v2162 = vmul.f32 %v2159, %v2161
  %v2163 = vadd.f32 %v2159, %v2162
  %vm2164 = vweird.f32 %v2127
  %vm2165 = vweird.f32 %v2159
  %vm2166 = vmor %vm2164, %vm2165
  %v2167 = vsel %vm2166, %v2159, %v2163
  %v2168 = vand.u32 2147483647, %v2127
  %vm2169 = vcmp.eq.f32.partialorder %v2168, 8.507059e+37
  %v2170 = vand.u32 %v2127, 2147483648
  %v2171 = vor.u32 1.1754944e-38, %v2170
  %v2172 = vsel %vm2169, %v2171, %v2167
  %v2173 = vmul.f32 1.0, %v2172
  %v2174 = vrcp.pop %v2128
  %v2175 = vmul.f32 %v2128, %v2174
  %v2176 = vsub.f32 1.0, %v2175
  %v2177 = vmul.f32 %v2174, %v2176
  %v2178 = vadd.f32 %v2174, %v2177
  %vm2179 = vweird.f32 %v2128
  %vm2180 = vweird.f32 %v2174
  %vm2181 = vmor %vm2179, %vm2180
  %v2182 = vsel %vm2181, %v2174, %v2178
  %v2183 = vand.u32 2147483647, %v2128
  %vm2184 = vcmp.eq.f32.partialorder %v2183, 8.507059e+37
  %v2185 = vand.u32 %v2128, 2147483648
  %v2186 = vor.u32 1.1754944e-38, %v2185
  %v2187 = vsel %vm2184, %v2186, %v2182
  %v2188 = vmul.f32 1.0, %v2187
  %vm2189 = vcmask 392192
  %2190 = vst.msk [vmem:[%s13] sm:$0xff] %vm2189, %v2143
  %2191 = vst.msk [vmem:[%s13 + $0x8] sm:$0xff] %vm2189, %v2158
  %2192 = vst.msk [vmem:[%s13 + $0x10] sm:$0xff] %vm2189, %v2173
  %2193 = vst.msk [vmem:[%s13 + $0x18] sm:$0xff] %vm2189, %v2188
  // Predicated region
  $region54: #{decoder_forward.1} parent=0 // pred_check
    _
  $region55: #{decoder_forward.1} parent=0 // pred_check_branch
    %2195 = sbr.rel (0) target = $region57
  $region56: #{decoder_forward.1} parent=0 // pred_region
    _
  $region57: #{decoder_forward.1} parent=0 // pred_fallthru
    _
  // Predicated region
  $region58: #{decoder_forward.1} parent=0 // pred_check
    _
  $region59: #{decoder_forward.1} parent=0 // pred_check_branch
    %2197 = sbr.rel (0) target = $region61
  $region60: #{decoder_forward.1} parent=0 // pred_region
    _
  $region61: #{decoder_forward.1} parent=0 // pred_fallthru
    _

</llo_original>
